<compile_context>
chip_gen: v5e
topology: v5e:2x2
jax: 0.10.0
libtpu: 0.0.40
codegen_flags: <defaults>
</compile_context>

<pallas_src>
import jax
import jax.numpy as jnp
from jax.experimental import pallas as pl
from jax.experimental.pallas import tpu as pltpu


# ---------------------------------------------------------------------------
# Fused kernel: Conv2d(3x3, pad=1) + bias + ReLU + Flatten + Linear.
#
#   act[b, h, w*F + f] = relu( bconv[f] + xcat[b, h, :] @ Tcat )
#   logits[b, n]       = bfc[n] + sum_h act[b, h, :] @ Wfc[h*WF:(h+1)*WF, n]
#
# xcat is the H-direction im2col of the zero-padded bf16 NHWC input (each
# output row h sees padded rows h, h+1, h+2 concatenated along K); Tcat is the
# concatenated banded (Toeplitz) conv weight.  The conv matmul output is
# directly the lane-dense (TB*H, W*F) activation slab.
# ---------------------------------------------------------------------------
def _fused_kernel(x_ref, t_ref, bconv_ref, wfc_ref, bfc_ref, o_ref, act_ref):
    TB, H, KC = x_ref.shape            # (batch block, rows, 3*(W+2)*C)
    WF = t_ref.shape[-1]               # W * F  (lane-dense, 128 here)
    NP = wfc_ref.shape[-1]             # classes padded to 128 lanes

    # --- conv: a single MXU push, M = TB*H, K = KC (~216), N = WF ----------
    lhs = x_ref[...].reshape(TB * H, KC)                      # bf16
    acc = jnp.dot(lhs, t_ref[...], preferred_element_type=jnp.float32)
    act = jnp.maximum(acc + bconv_ref[...], 0.0)              # f32 epilogue
    act_ref[...] = act.astype(act_ref.dtype)                  # bf16 VMEM scratch

    # --- FC: accumulate over the H row-slices of the resident activation ---
    # (flatten order is (h, w, f); the FC weight rows were pre-reordered to
    #  match, so no in-kernel transpose/relayout is needed).
    logits = jnp.broadcast_to(bfc_ref[...], (TB, NP)).astype(jnp.float32)
    for h in range(H):                                        # static unroll
        if TB == 1:
            a_h = act_ref[pl.ds(h, 1), :]                     # (1, WF) bf16
        else:
            a_h = act_ref[pl.ds(h, TB, stride=H), :]          # rows b*H + h
        w_h = wfc_ref[pl.ds(h * WF, WF), :]                   # (WF, NP) bf16
        logits = logits + jnp.dot(a_h, w_h,
                                  preferred_element_type=jnp.float32)
    o_ref[0] = logits


def _pick_tb(B, H, target_rows=256):
    """Batch block so TB*H approaches the MXU row depth, but keep >=2 grid
    steps when possible (v7x has 2 TensorCores; grid sharding uses both)."""
    tb = max(1, min(B, max(1, target_rows // max(H, 1))))
    while B % tb:
        tb -= 1
    if B >= 2 and B // tb < 2:
        tb = max(1, B // 2)
        while B % tb:
            tb -= 1
    return tb


def fused_conv_relu_fc(xcat, t_cat, bconv_row, wfc, bfc_row):
    """xcat: (B, H, 3*(W+2)*C) bf16, t_cat: (3*(W+2)*C, W*F) bf16,
    bconv_row: (1, W*F) f32, wfc: (H*W*F, NP) bf16, bfc_row: (1, NP) f32
    -> logits (B, NP) f32."""
    B, H, KC = xcat.shape
    WF = t_cat.shape[-1]
    KFC, NP = wfc.shape
    assert KFC == H * WF

    TB = _pick_tb(B, H)
    G = B // TB

    flops = 2 * B * H * KC * WF + 2 * B * (H * WF) * NP
    bytes_accessed = int(xcat.size * 2 + t_cat.size * 2 + wfc.size * 2
                         + (WF + NP) * 4 + B * NP * 4)

    # TODO(synk): for large H / 3D volumes add an inner row-tile loop and
    # budget it against v7x's 64 MiB physical VMEM (vs 128 MiB on v5e/v6e).
    out = pl.pallas_call(
        _fused_kernel,
        out_shape=jax.ShapeDtypeStruct((G, TB, NP), jnp.float32),
        grid=(G,),
        in_specs=[
            pl.BlockSpec((TB, H, KC), lambda i: (i, 0, 0)),   # per-step batch block
            pl.BlockSpec((KC, WF), lambda i: (0, 0)),         # conv weight (resident)
            pl.BlockSpec((1, WF), lambda i: (0, 0)),          # conv bias
            pl.BlockSpec((KFC, NP), lambda i: (0, 0)),        # FC weight (resident)
            pl.BlockSpec((1, NP), lambda i: (0, 0)),          # FC bias
        ],
        out_specs=pl.BlockSpec((1, TB, NP), lambda i: (i, 0, 0)),
        scratch_shapes=[pltpu.VMEM((TB * H, WF), jnp.bfloat16)],
        compiler_params=pltpu.CompilerParams(
            dimension_semantics=("parallel",),                # v7x: 2 TCs split B
            vmem_limit_bytes=32 * 1024 * 1024),
        cost_estimate=pl.CostEstimate(flops=flops, transcendentals=0,
                                      bytes_accessed=bytes_accessed),
    )(xcat, t_cat, bconv_row, wfc, bfc_row)
    return out.reshape(B, NP)


# ---------------------------------------------------------------------------
# Wrapper-side (tiny, one-time) weight transforms.
# ---------------------------------------------------------------------------
def _build_row_toeplitz(w_conv, W):
    """w_conv: (3, 3, C, F) in (kh, kw, C_in, C_out) layout.
    Returns T of shape (3, (W+2)*C, W*F) with
    T[ki, p*C + c, w*F + f] = w_conv[ki, kj, c, f] iff p == w + kj.
    TODO(synk): real torch Conv2d weights are (C_out, C_in, kh, kw); permute
    with weight.transpose(2, 3, 1, 0) before calling (synthetic init here is
    already (kh, kw, C_in, C_out))."""
    _, _, C, F = w_conv.shape
    p = jnp.arange(W + 2)[None, :, None]               # (1, W+2, 1)
    wv = jnp.arange(W)[None, None, :]                  # (1, 1, W)
    kj = jnp.arange(3)[:, None, None]                  # (3, 1, 1)
    masks = (p == wv + kj).astype(w_conv.dtype)        # (3, W+2, W)
    t = jnp.einsum('jpw,ijcf->ipcwf', masks, w_conv)   # (3, W+2, C, W, F)
    return t.reshape(3, (W + 2) * C, W * F)


# ---------------------------------------------------------------------------
# Forward pass.
# ---------------------------------------------------------------------------
def network_forward(x_nchw, params):
    """x_nchw: (B, C, H, W) float32 -> logits (B, n_classes) float32."""
    B, C, H, W = x_nchw.shape
    w_conv, b_conv, w_fc, b_fc = (params["w_conv"], params["b_conv"],
                                  params["w_fc"], params["b_fc"])
    F = w_conv.shape[-1]
    n_cls = w_fc.shape[-1]
    WF = W * F
    KR = (W + 2) * C
    NP = ((n_cls + 127) // 128) * 128

    # --- input prep: NCHW -> padded NHWC rows -> im2col along H, in bf16 ----
    # TODO(synk): for non-toy H/W/volumes fold the transpose, zero-padding and
    # the H-im2col into the kernel (pl.when row masks + VMEM scratch) instead
    # of materializing them as XLA ops in HBM.
    x_nhwc = jnp.transpose(x_nchw, (0, 2, 3, 1)).astype(jnp.bfloat16)
    xp = jnp.pad(x_nhwc, ((0, 0), (1, 1), (1, 1), (0, 0)))        # zero pad
    xrows = xp.reshape(B, H + 2, KR)                              # free reshape
    xcat = jnp.concatenate(                                       # (B, H, 3*KR)
        [xrows[:, 0:H], xrows[:, 1:H + 1], xrows[:, 2:H + 2]], axis=-1)

    # --- one-time weight transforms -----------------------------------------
    t_cat = (_build_row_toeplitz(w_conv, W)
             .reshape(3 * KR, WF).astype(jnp.bfloat16))           # (3*KR, W*F)
    bconv_row = jnp.tile(b_conv, W).reshape(1, WF).astype(jnp.float32)

    # PyTorch flatten order is NCHW (f, h, w); our lane-dense activation is in
    # (h, w, f) order, so reorder the FC weight rows once and pad classes to a
    # lane-dense 128 columns (sliced back after the kernel).
    w_fc_r = (w_fc.reshape(F, H, W, n_cls)
                   .transpose(1, 2, 0, 3)
                   .reshape(H * W * F, n_cls))
    w_fc_p = jnp.pad(w_fc_r, ((0, 0), (0, NP - n_cls))).astype(jnp.bfloat16)
    b_fc_p = jnp.pad(b_fc, (0, NP - n_cls)).reshape(1, NP).astype(jnp.float32)

    logits_p = fused_conv_relu_fc(xcat, t_cat, bconv_row, w_fc_p, b_fc_p)
    return logits_p[:, :n_cls]


# ---------------------------------------------------------------------------
# Deterministic parameter init (synthetic; shapes implied by the layers).
# ---------------------------------------------------------------------------
def init_params(key, C, H, W, F=8, n_classes=2):
    k1, k2, k3, k4 = jax.random.split(key, 4)
    # conv weight laid out as (kh, kw, C_in, C_out); FC weight rows follow the
    # PyTorch NCHW (C, H, W) flatten order.
    w_conv = 0.05 * jax.random.normal(k1, (3, 3, C, F), jnp.float32)
    b_conv = 0.01 * jax.random.normal(k2, (F,), jnp.float32)
    w_fc = 0.05 * jax.random.normal(k3, (F * H * W, n_classes), jnp.float32)
    b_fc = 0.01 * jax.random.normal(k4, (n_classes,), jnp.float32)
    return {"w_conv": w_conv, "b_conv": b_conv, "w_fc": w_fc, "b_fc": b_fc}


if __name__ == "__main__":
    key = jax.random.PRNGKey(0)
    kx, kp = jax.random.split(key)

    B, C, H, W = 2, 4, 16, 16            # small NCHW input (W*F = 128 lanes)
    F, n_cls = 8, 2
    x = jax.random.normal(kx, (B, C, H, W), jnp.float32)
    params = init_params(kp, C, H, W, F=F, n_classes=n_cls)

    out = jax.jit(network_forward)(x, params)
    out = jax.block_until_ready(out)
    assert out.shape == (B, n_cls) and out.dtype == jnp.float32

    # Pure-JAX f32 reference (conv + relu + NCHW flatten + linear); loose
    # tolerance accounts for the bf16 MXU operands in the kernel path.
    x_nhwc_f32 = jnp.transpose(x, (0, 2, 3, 1))
    conv_ref = jax.lax.conv_general_dilated(
        x_nhwc_f32, params["w_conv"], (1, 1), "SAME",
        dimension_numbers=("NHWC", "HWIO", "NHWC"))
    act_ref = jnp.maximum(conv_ref + params["b_conv"], 0.0)
    flat_ref = jnp.transpose(act_ref, (0, 3, 1, 2)).reshape(B, -1)
    ref = flat_ref @ params["w_fc"] + params["b_fc"]
    assert jnp.allclose(out, ref, atol=5e-2, rtol=5e-2)

    print("KERNEL_OK")
</pallas_src>

<mosaic_0001>
module attributes {stable_mosaic.version = 11 : i64} {
  func.func @_fused_kernel(%arg0: i32, %arg1: memref<1x16x216xbf16, #tpu.memory_space<vmem>>, %arg2: memref<216x128xbf16, #tpu.memory_space<vmem>>, %arg3: memref<1x128xf32, #tpu.memory_space<vmem>>, %arg4: memref<2048x128xbf16, #tpu.memory_space<vmem>>, %arg5: memref<1x128xf32, #tpu.memory_space<vmem>>, %arg6: memref<1x1x128xf32, #tpu.memory_space<vmem>>, %arg7: memref<16x128xbf16, #tpu.memory_space<vmem>>) attributes {dimension_semantics = [#tpu.dimension_semantics<parallel>], iteration_bounds = array<i64: 2>, scalar_prefetch = 0 : i64, scratch_operands = 1 : i64, tpu.core_type = #tpu.core_type<tc>, window_params = [{transform_indices = @transform_0, window_bounds = array<i64: 1, 16, 216>}, {pipeline_mode = #tpu.pipeline_mode<synchronous>, transform_indices = @transform_1, window_bounds = array<i64: 216, 128>}, {pipeline_mode = #tpu.pipeline_mode<synchronous>, transform_indices = @transform_2, window_bounds = array<i64: 1, 128>}, {pipeline_mode = #tpu.pipeline_mode<synchronous>, transform_indices = @transform_3, window_bounds = array<i64: 2048, 128>}, {pipeline_mode = #tpu.pipeline_mode<synchronous>, transform_indices = @transform_4, window_bounds = array<i64: 1, 128>}, {transform_indices = @transform_5, window_bounds = array<i64: 1, 1, 128>}]} {
    %c0 = arith.constant 0 : index
    %c0_0 = arith.constant 0 : index
    %c0_1 = arith.constant 0 : index
    %0 = vector.load %arg1[%c0, %c0_0, %c0_1] : memref<1x16x216xbf16, #tpu.memory_space<vmem>>, vector<1x16x216xbf16>
    %1 = vector.shape_cast %0 : vector<1x16x216xbf16> to vector<16x216xbf16>
    %c0_2 = arith.constant 0 : index
    %c0_3 = arith.constant 0 : index
    %2 = vector.load %arg2[%c0_2, %c0_3] : memref<216x128xbf16, #tpu.memory_space<vmem>>, vector<216x128xbf16>
    %cst = arith.constant dense<0.000000e+00> : vector<16x128xf32>
    %3 = tpu.matmul %1, %2, %cst {dimension_numbers = #tpu.dot_dimension_numbers<[1], [0], [0], [1], [0, 0, 1, 1], [], []>} : vector<16x216xbf16>, vector<216x128xbf16>, vector<16x128xf32> -> vector<16x128xf32>
    %c0_4 = arith.constant 0 : index
    %c0_5 = arith.constant 0 : index
    %4 = vector.load %arg3[%c0_4, %c0_5] : memref<1x128xf32, #tpu.memory_space<vmem>>, vector<1x128xf32>
    %5 = vector.broadcast %4 : vector<1x128xf32> to vector<16x128xf32>
    %6 = arith.addf %3, %5 : vector<16x128xf32>
    %cst_6 = arith.constant 0.000000e+00 : f32
    %7 = vector.broadcast %cst_6 : f32 to vector<16x128xf32>
    %8 = arith.maximumf %6, %7 : vector<16x128xf32>
    %9 = arith.truncf %8 : vector<16x128xf32> to vector<16x128xbf16>
    %c0_7 = arith.constant 0 : index
    %c0_8 = arith.constant 0 : index
    %10 = vector.load %arg7[%c0_7, %c0_8] : memref<16x128xbf16, #tpu.memory_space<vmem>>, vector<16x128xbf16>
    tpu.vector_store %arg7[%c0_7, %c0_8], %9 {strides = array<i32>} : memref<16x128xbf16, #tpu.memory_space<vmem>>, vector<16x128xbf16>,
    %c0_9 = arith.constant 0 : index
    %c0_10 = arith.constant 0 : index
    %11 = vector.load %arg5[%c0_9, %c0_10] : memref<1x128xf32, #tpu.memory_space<vmem>>, vector<1x128xf32>
    %c0_11 = arith.constant 0 : index
    %c0_12 = arith.constant 0 : index
    %12 = vector.load %arg7[%c0_11, %c0_12] : memref<16x128xbf16, #tpu.memory_space<vmem>>, vector<1x128xbf16>
    %c0_13 = arith.constant 0 : index
    %c0_14 = arith.constant 0 : index
    %13 = vector.load %arg4[%c0_13, %c0_14] : memref<2048x128xbf16, #tpu.memory_space<vmem>>, vector<128x128xbf16>
    %cst_15 = arith.constant dense<0.000000e+00> : vector<1x128xf32>
    %14 = tpu.matmul %12, %13, %cst_15 {dimension_numbers = #tpu.dot_dimension_numbers<[1], [0], [0], [1], [0, 0, 1, 1], [], []>} : vector<1x128xbf16>, vector<128x128xbf16>, vector<1x128xf32> -> vector<1x128xf32>
    %15 = arith.addf %11, %14 : vector<1x128xf32>
    %c1 = arith.constant 1 : index
    %c0_16 = arith.constant 0 : index
    %16 = vector.load %arg7[%c1, %c0_16] : memref<16x128xbf16, #tpu.memory_space<vmem>>, vector<1x128xbf16>
    %c128 = arith.constant 128 : index
    %c0_17 = arith.constant 0 : index
    %17 = vector.load %arg4[%c128, %c0_17] : memref<2048x128xbf16, #tpu.memory_space<vmem>>, vector<128x128xbf16>
    %cst_18 = arith.constant dense<0.000000e+00> : vector<1x128xf32>
    %18 = tpu.matmul %16, %17, %cst_18 {dimension_numbers = #tpu.dot_dimension_numbers<[1], [0], [0], [1], [0, 0, 1, 1], [], []>} : vector<1x128xbf16>, vector<128x128xbf16>, vector<1x128xf32> -> vector<1x128xf32>
    %19 = arith.addf %15, %18 : vector<1x128xf32>
    %c2 = arith.constant 2 : index
    %c0_19 = arith.constant 0 : index
    %20 = vector.load %arg7[%c2, %c0_19] : memref<16x128xbf16, #tpu.memory_space<vmem>>, vector<1x128xbf16>
    %c256 = arith.constant 256 : index
    %c0_20 = arith.constant 0 : index
    %21 = vector.load %arg4[%c256, %c0_20] : memref<2048x128xbf16, #tpu.memory_space<vmem>>, vector<128x128xbf16>
    %cst_21 = arith.constant dense<0.000000e+00> : vector<1x128xf32>
    %22 = tpu.matmul %20, %21, %cst_21 {dimension_numbers = #tpu.dot_dimension_numbers<[1], [0], [0], [1], [0, 0, 1, 1], [], []>} : vector<1x128xbf16>, vector<128x128xbf16>, vector<1x128xf32> -> vector<1x128xf32>
    %23 = arith.addf %19, %22 : vector<1x128xf32>
    %c3 = arith.constant 3 : index
    %c0_22 = arith.constant 0 : index
    %24 = vector.load %arg7[%c3, %c0_22] : memref<16x128xbf16, #tpu.memory_space<vmem>>, vector<1x128xbf16>
    %c384 = arith.constant 384 : index
    %c0_23 = arith.constant 0 : index
    %25 = vector.load %arg4[%c384, %c0_23] : memref<2048x128xbf16, #tpu.memory_space<vmem>>, vector<128x128xbf16>
    %cst_24 = arith.constant dense<0.000000e+00> : vector<1x128xf32>
    %26 = tpu.matmul %24, %25, %cst_24 {dimension_numbers = #tpu.dot_dimension_numbers<[1], [0], [0], [1], [0, 0, 1, 1], [], []>} : vector<1x128xbf16>, vector<128x128xbf16>, vector<1x128xf32> -> vector<1x128xf32>
    %27 = arith.addf %23, %26 : vector<1x128xf32>
    %c4 = arith.constant 4 : index
    %c0_25 = arith.constant 0 : index
    %28 = vector.load %arg7[%c4, %c0_25] : memref<16x128xbf16, #tpu.memory_space<vmem>>, vector<1x128xbf16>
    %c512 = arith.constant 512 : index
    %c0_26 = arith.constant 0 : index
    %29 = vector.load %arg4[%c512, %c0_26] : memref<2048x128xbf16, #tpu.memory_space<vmem>>, vector<128x128xbf16>
    %cst_27 = arith.constant dense<0.000000e+00> : vector<1x128xf32>
    %30 = tpu.matmul %28, %29, %cst_27 {dimension_numbers = #tpu.dot_dimension_numbers<[1], [0], [0], [1], [0, 0, 1, 1], [], []>} : vector<1x128xbf16>, vector<128x128xbf16>, vector<1x128xf32> -> vector<1x128xf32>
    %31 = arith.addf %27, %30 : vector<1x128xf32>
    %c5 = arith.constant 5 : index
    %c0_28 = arith.constant 0 : index
    %32 = vector.load %arg7[%c5, %c0_28] : memref<16x128xbf16, #tpu.memory_space<vmem>>, vector<1x128xbf16>
    %c640 = arith.constant 640 : index
    %c0_29 = arith.constant 0 : index
    %33 = vector.load %arg4[%c640, %c0_29] : memref<2048x128xbf16, #tpu.memory_space<vmem>>, vector<128x128xbf16>
    %cst_30 = arith.constant dense<0.000000e+00> : vector<1x128xf32>
    %34 = tpu.matmul %32, %33, %cst_30 {dimension_numbers = #tpu.dot_dimension_numbers<[1], [0], [0], [1], [0, 0, 1, 1], [], []>} : vector<1x128xbf16>, vector<128x128xbf16>, vector<1x128xf32> -> vector<1x128xf32>
    %35 = arith.addf %31, %34 : vector<1x128xf32>
    %c6 = arith.constant 6 : index
    %c0_31 = arith.constant 0 : index
    %36 = vector.load %arg7[%c6, %c0_31] : memref<16x128xbf16, #tpu.memory_space<vmem>>, vector<1x128xbf16>
    %c768 = arith.constant 768 : index
    %c0_32 = arith.constant 0 : index
    %37 = vector.load %arg4[%c768, %c0_32] : memref<2048x128xbf16, #tpu.memory_space<vmem>>, vector<128x128xbf16>
    %cst_33 = arith.constant dense<0.000000e+00> : vector<1x128xf32>
    %38 = tpu.matmul %36, %37, %cst_33 {dimension_numbers = #tpu.dot_dimension_numbers<[1], [0], [0], [1], [0, 0, 1, 1], [], []>} : vector<1x128xbf16>, vector<128x128xbf16>, vector<1x128xf32> -> vector<1x128xf32>
    %39 = arith.addf %35, %38 : vector<1x128xf32>
    %c7 = arith.constant 7 : index
    %c0_34 = arith.constant 0 : index
    %40 = vector.load %arg7[%c7, %c0_34] : memref<16x128xbf16, #tpu.memory_space<vmem>>, vector<1x128xbf16>
    %c896 = arith.constant 896 : index
    %c0_35 = arith.constant 0 : index
    %41 = vector.load %arg4[%c896, %c0_35] : memref<2048x128xbf16, #tpu.memory_space<vmem>>, vector<128x128xbf16>
    %cst_36 = arith.constant dense<0.000000e+00> : vector<1x128xf32>
    %42 = tpu.matmul %40, %41, %cst_36 {dimension_numbers = #tpu.dot_dimension_numbers<[1], [0], [0], [1], [0, 0, 1, 1], [], []>} : vector<1x128xbf16>, vector<128x128xbf16>, vector<1x128xf32> -> vector<1x128xf32>
    %43 = arith.addf %39, %42 : vector<1x128xf32>
    %c8 = arith.constant 8 : index
    %c0_37 = arith.constant 0 : index
    %44 = vector.load %arg7[%c8, %c0_37] : memref<16x128xbf16, #tpu.memory_space<vmem>>, vector<1x128xbf16>
    %c1024 = arith.constant 1024 : index
    %c0_38 = arith.constant 0 : index
    %45 = vector.load %arg4[%c1024, %c0_38] : memref<2048x128xbf16, #tpu.memory_space<vmem>>, vector<128x128xbf16>
    %cst_39 = arith.constant dense<0.000000e+00> : vector<1x128xf32>
    %46 = tpu.matmul %44, %45, %cst_39 {dimension_numbers = #tpu.dot_dimension_numbers<[1], [0], [0], [1], [0, 0, 1, 1], [], []>} : vector<1x128xbf16>, vector<128x128xbf16>, vector<1x128xf32> -> vector<1x128xf32>
    %47 = arith.addf %43, %46 : vector<1x128xf32>
    %c9 = arith.constant 9 : index
    %c0_40 = arith.constant 0 : index
    %48 = vector.load %arg7[%c9, %c0_40] : memref<16x128xbf16, #tpu.memory_space<vmem>>, vector<1x128xbf16>
    %c1152 = arith.constant 1152 : index
    %c0_41 = arith.constant 0 : index
    %49 = vector.load %arg4[%c1152, %c0_41] : memref<2048x128xbf16, #tpu.memory_space<vmem>>, vector<128x128xbf16>
    %cst_42 = arith.constant dense<0.000000e+00> : vector<1x128xf32>
    %50 = tpu.matmul %48, %49, %cst_42 {dimension_numbers = #tpu.dot_dimension_numbers<[1], [0], [0], [1], [0, 0, 1, 1], [], []>} : vector<1x128xbf16>, vector<128x128xbf16>, vector<1x128xf32> -> vector<1x128xf32>
    %51 = arith.addf %47, %50 : vector<1x128xf32>
    %c10 = arith.constant 10 : index
    %c0_43 = arith.constant 0 : index
    %52 = vector.load %arg7[%c10, %c0_43] : memref<16x128xbf16, #tpu.memory_space<vmem>>, vector<1x128xbf16>
    %c1280 = arith.constant 1280 : index
    %c0_44 = arith.constant 0 : index
    %53 = vector.load %arg4[%c1280, %c0_44] : memref<2048x128xbf16, #tpu.memory_space<vmem>>, vector<128x128xbf16>
    %cst_45 = arith.constant dense<0.000000e+00> : vector<1x128xf32>
    %54 = tpu.matmul %52, %53, %cst_45 {dimension_numbers = #tpu.dot_dimension_numbers<[1], [0], [0], [1], [0, 0, 1, 1], [], []>} : vector<1x128xbf16>, vector<128x128xbf16>, vector<1x128xf32> -> vector<1x128xf32>
    %55 = arith.addf %51, %54 : vector<1x128xf32>
    %c11 = arith.constant 11 : index
    %c0_46 = arith.constant 0 : index
    %56 = vector.load %arg7[%c11, %c0_46] : memref<16x128xbf16, #tpu.memory_space<vmem>>, vector<1x128xbf16>
    %c1408 = arith.constant 1408 : index
    %c0_47 = arith.constant 0 : index
    %57 = vector.load %arg4[%c1408, %c0_47] : memref<2048x128xbf16, #tpu.memory_space<vmem>>, vector<128x128xbf16>
    %cst_48 = arith.constant dense<0.000000e+00> : vector<1x128xf32>
    %58 = tpu.matmul %56, %57, %cst_48 {dimension_numbers = #tpu.dot_dimension_numbers<[1], [0], [0], [1], [0, 0, 1, 1], [], []>} : vector<1x128xbf16>, vector<128x128xbf16>, vector<1x128xf32> -> vector<1x128xf32>
    %59 = arith.addf %55, %58 : vector<1x128xf32>
    %c12 = arith.constant 12 : index
    %c0_49 = arith.constant 0 : index
    %60 = vector.load %arg7[%c12, %c0_49] : memref<16x128xbf16, #tpu.memory_space<vmem>>, vector<1x128xbf16>
    %c1536 = arith.constant 1536 : index
    %c0_50 = arith.constant 0 : index
    %61 = vector.load %arg4[%c1536, %c0_50] : memref<2048x128xbf16, #tpu.memory_space<vmem>>, vector<128x128xbf16>
    %cst_51 = arith.constant dense<0.000000e+00> : vector<1x128xf32>
    %62 = tpu.matmul %60, %61, %cst_51 {dimension_numbers = #tpu.dot_dimension_numbers<[1], [0], [0], [1], [0, 0, 1, 1], [], []>} : vector<1x128xbf16>, vector<128x128xbf16>, vector<1x128xf32> -> vector<1x128xf32>
    %63 = arith.addf %59, %62 : vector<1x128xf32>
    %c13 = arith.constant 13 : index
    %c0_52 = arith.constant 0 : index
    %64 = vector.load %arg7[%c13, %c0_52] : memref<16x128xbf16, #tpu.memory_space<vmem>>, vector<1x128xbf16>
    %c1664 = arith.constant 1664 : index
    %c0_53 = arith.constant 0 : index
    %65 = vector.load %arg4[%c1664, %c0_53] : memref<2048x128xbf16, #tpu.memory_space<vmem>>, vector<128x128xbf16>
    %cst_54 = arith.constant dense<0.000000e+00> : vector<1x128xf32>
    %66 = tpu.matmul %64, %65, %cst_54 {dimension_numbers = #tpu.dot_dimension_numbers<[1], [0], [0], [1], [0, 0, 1, 1], [], []>} : vector<1x128xbf16>, vector<128x128xbf16>, vector<1x128xf32> -> vector<1x128xf32>
    %67 = arith.addf %63, %66 : vector<1x128xf32>
    %c14 = arith.constant 14 : index
    %c0_55 = arith.constant 0 : index
    %68 = vector.load %arg7[%c14, %c0_55] : memref<16x128xbf16, #tpu.memory_space<vmem>>, vector<1x128xbf16>
    %c1792 = arith.constant 1792 : index
    %c0_56 = arith.constant 0 : index
    %69 = vector.load %arg4[%c1792, %c0_56] : memref<2048x128xbf16, #tpu.memory_space<vmem>>, vector<128x128xbf16>
    %cst_57 = arith.constant dense<0.000000e+00> : vector<1x128xf32>
    %70 = tpu.matmul %68, %69, %cst_57 {dimension_numbers = #tpu.dot_dimension_numbers<[1], [0], [0], [1], [0, 0, 1, 1], [], []>} : vector<1x128xbf16>, vector<128x128xbf16>, vector<1x128xf32> -> vector<1x128xf32>
    %71 = arith.addf %67, %70 : vector<1x128xf32>
    %c15 = arith.constant 15 : index
    %c0_58 = arith.constant 0 : index
    %72 = vector.load %arg7[%c15, %c0_58] : memref<16x128xbf16, #tpu.memory_space<vmem>>, vector<1x128xbf16>
    %c1920 = arith.constant 1920 : index
    %c0_59 = arith.constant 0 : index
    %73 = vector.load %arg4[%c1920, %c0_59] : memref<2048x128xbf16, #tpu.memory_space<vmem>>, vector<128x128xbf16>
    %cst_60 = arith.constant dense<0.000000e+00> : vector<1x128xf32>
    %74 = tpu.matmul %72, %73, %cst_60 {dimension_numbers = #tpu.dot_dimension_numbers<[1], [0], [0], [1], [0, 0, 1, 1], [], []>} : vector<1x128xbf16>, vector<128x128xbf16>, vector<1x128xf32> -> vector<1x128xf32>
    %75 = arith.addf %71, %74 : vector<1x128xf32>
    %c0_61 = arith.constant 0 : index
    %c0_62 = arith.constant 0 : index
    %c0_63 = arith.constant 0 : index
    %76 = vector.load %arg6[%c0_61, %c0_62, %c0_63] : memref<1x1x128xf32, #tpu.memory_space<vmem>>, vector<1x1x128xf32>
    %77 = vector.shape_cast %76 : vector<1x1x128xf32> to vector<1x128xf32>
    %78 = vector.shape_cast %75 : vector<1x128xf32> to vector<1x1x128xf32>
    tpu.vector_store %arg6[%c0_61, %c0_62, %c0_63], %78 {strides = array<i32>} : memref<1x1x128xf32, #tpu.memory_space<vmem>>, vector<1x1x128xf32>,
    return
  }
  func.func @transform_0(%arg0: i32) -> (i32, i32, i32) {
    %c0_i32 = arith.constant 0 : i32
    %c0_i32_0 = arith.constant 0 : i32
    %c0_i32_1 = arith.constant 0 : i32
    return %arg0, %c0_i32, %c0_i32_0 : i32, i32, i32
  }
  func.func @transform_1(%arg0: i32) -> (i32, i32) {
    %c0_i32 = arith.constant 0 : i32
    %c0_i32_0 = arith.constant 0 : i32
    %c0_i32_1 = arith.constant 0 : i32
    return %c0_i32, %c0_i32_0 : i32, i32
  }
  func.func @transform_2(%arg0: i32) -> (i32, i32) {
    %c0_i32 = arith.constant 0 : i32
    %c0_i32_0 = arith.constant 0 : i32
    %c0_i32_1 = arith.constant 0 : i32
    return %c0_i32, %c0_i32_0 : i32, i32
  }
  func.func @transform_3(%arg0: i32) -> (i32, i32) {
    %c0_i32 = arith.constant 0 : i32
    %c0_i32_0 = arith.constant 0 : i32
    %c0_i32_1 = arith.constant 0 : i32
    return %c0_i32, %c0_i32_0 : i32, i32
  }
  func.func @transform_4(%arg0: i32) -> (i32, i32) {
    %c0_i32 = arith.constant 0 : i32
    %c0_i32_0 = arith.constant 0 : i32
    %c0_i32_1 = arith.constant 0 : i32
    return %c0_i32, %c0_i32_0 : i32, i32
  }
  func.func @transform_5(%arg0: i32) -> (i32, i32, i32) {
    %c0_i32 = arith.constant 0 : i32
    %c0_i32_0 = arith.constant 0 : i32
    %c0_i32_1 = arith.constant 0 : i32
    return %arg0, %c0_i32, %c0_i32_0 : i32, i32, i32
  }
}

</mosaic_0001>

<llo_original>
// kernel: tile.8
$region0: #{tile.8}
  #allocation0 [shape = 's32[1]{0}', space=sflag, size = 0x4, scoped, tag = 'scoped memory for tile.8']
  %s0 = inlined_call_operand.vmem [shape: f32[8], index: 0, kind: input, shape index: {}]
  %s1 = inlined_call_operand.vmem [shape: f32[16,8], index: 1, kind: output, shape index: {}]
  // Predicated region
  $region2: #{tile.8} parent=0 // pred_check
    _
  $region3: #{tile.8} parent=0 // pred_check_branch
    %3 = sbr.rel (0) target = $region5
  $region4: #{tile.8} parent=0 // pred_region
    _
  $region5: #{tile.8} parent=0 // pred_fallthru
    _
  %v4 = vld [vmem:[%s0] ss:$0 sm:$0xff]
  %5 = vst [vmem:[%s1] sm:$0xff] %v4
  %s6 = scalar_lea.vmem %s1, 8
  %7 = vst [vmem:[%s6] sm:$0xff] %v4

// kernel: tile.9
$region0: #{tile.9}
  %s0 = inlined_call_operand.vmem [shape: f32[16,8], index: 0, kind: input, shape index: {}]
  %s1 = inlined_call_operand.vmem [shape: f32[1,128], index: 1, kind: output, shape index: {}]
  $region1: #{tile.9} parent=0
    #allocation0 [shape = 'u8[4096]{0}', space=vmem, size = 0x1000, scoped, tag = 'scoped mem for output reshape']
    %v2 = vld [vmem:[%s0] sm:$0x1]
    %vm3 = vcmask 64512
    %4 = vst.msk [vmem:[#allocation0] sm:$0x1] %vm3, %v2
    %s5 = scalar_lea.vmem %s0, 15
    %v6 = vld [vmem:[%s5] sm:$0x1]
    %7 = vrot.lane.b32.xlu0 %v6, 120
    %v8 = vpop.permute.xlu0 %7
    %vm9 = vcmask 1048512
    %10 = vst.msk [vmem:[#allocation0] sm:$0x1] %vm9, %v8
    %s11 = scalar_lea.vmem %s0, 14
    %v12 = vld [vmem:[%s11] sm:$0x1]
    %13 = vrot.lane.b32.xlu0 %v12, 112
    %v14 = vpop.permute.xlu0 %13
    %vm15 = vcmask 982912
    %16 = vst.msk [vmem:[#allocation0] sm:$0x1] %vm15, %v14
    %s17 = scalar_lea.vmem %s0, 13
    %v18 = vld [vmem:[%s17] sm:$0x1]
    %19 = vrot.lane.b32.xlu0 %v18, 104
    %v20 = vpop.permute.xlu0 %19
    %vm21 = vcmask 917312
    %22 = vst.msk [vmem:[#allocation0] sm:$0x1] %vm21, %v20
    %s23 = scalar_lea.vmem %s0, 12
    %v24 = vld [vmem:[%s23] sm:$0x1]
    %25 = vrot.lane.b32.xlu0 %v24, 96
    %v26 = vpop.permute.xlu0 %25
    %vm27 = vcmask 851712
    %28 = vst.msk [vmem:[#allocation0] sm:$0x1] %vm27, %v26
    %s29 = scalar_lea.vmem %s0, 11
    %v30 = vld [vmem:[%s29] sm:$0x1]
    %31 = vrot.lane.b32.xlu0 %v30, 88
    %v32 = vpop.permute.xlu0 %31
    %vm33 = vcmask 786112
    %34 = vst.msk [vmem:[#allocation0] sm:$0x1] %vm33, %v32
    %s35 = scalar_lea.vmem %s0, 10
    %v36 = vld [vmem:[%s35] sm:$0x1]
    %37 = vrot.lane.b32.xlu0 %v36, 80
    %v38 = vpop.permute.xlu0 %37
    %vm39 = vcmask 720512
    %40 = vst.msk [vmem:[#allocation0] sm:$0x1] %vm39, %v38
    %s41 = scalar_lea.vmem %s0, 9
    %v42 = vld [vmem:[%s41] sm:$0x1]
    %43 = vrot.lane.b32.xlu0 %v42, 72
    %v44 = vpop.permute.xlu0 %43
    %vm45 = vcmask 654912
    %46 = vst.msk [vmem:[#allocation0] sm:$0x1] %vm45, %v44
    %s47 = scalar_lea.vmem %s0, 8
    %v48 = vld [vmem:[%s47] sm:$0x1]
    %49 = vrot.lane.b32.xlu0 %v48, 64
    %v50 = vpop.permute.xlu0 %49
    %vm51 = vcmask 589312
    %52 = vst.msk [vmem:[#allocation0] sm:$0x1] %vm51, %v50
    %s53 = scalar_lea.vmem %s0, 7
    %v54 = vld [vmem:[%s53] sm:$0x1]
    %55 = vrot.lane.b32.xlu0 %v54, 56
    %v56 = vpop.permute.xlu0 %55
    %vm57 = vcmask 523712
    %58 = vst.msk [vmem:[#allocation0] sm:$0x1] %vm57, %v56
    %s59 = scalar_lea.vmem %s0, 6
    %v60 = vld [vmem:[%s59] sm:$0x1]
    %61 = vrot.lane.b32.xlu0 %v60, 48
    %v62 = vpop.permute.xlu0 %61
    %vm63 = vcmask 458112
    %64 = vst.msk [vmem:[#allocation0] sm:$0x1] %vm63, %v62
    %s65 = scalar_lea.vmem %s0, 5
    %v66 = vld [vmem:[%s65] sm:$0x1]
    %67 = vrot.lane.b32.xlu0 %v66, 40
    %v68 = vpop.permute.xlu0 %67
    %vm69 = vcmask 392512
    %70 = vst.msk [vmem:[#allocation0] sm:$0x1] %vm69, %v68
    %s71 = scalar_lea.vmem %s0, 4
    %v72 = vld [vmem:[%s71] sm:$0x1]
    %73 = vrot.lane.b32.xlu0 %v72, 32
    %v74 = vpop.permute.xlu0 %73
    %vm75 = vcmask 326912
    %76 = vst.msk [vmem:[#allocation0] sm:$0x1] %vm75, %v74
    %s77 = scalar_lea.vmem %s0, 3
    %v78 = vld [vmem:[%s77] sm:$0x1]
    %79 = vrot.lane.b32.xlu0 %v78, 24
    %v80 = vpop.permute.xlu0 %79
    %vm81 = vcmask 261312
    %82 = vst.msk [vmem:[#allocation0] sm:$0x1] %vm81, %v80
    %s83 = scalar_lea.vmem %s0, 2
    %v84 = vld [vmem:[%s83] sm:$0x1]
    %85 = vrot.lane.b32.xlu0 %v84, 16
    %v86 = vpop.permute.xlu0 %85
    %vm87 = vcmask 195712
    %88 = vst.msk [vmem:[#allocation0] sm:$0x1] %vm87, %v86
    %s89 = scalar_lea.vmem %s0, 1
    %v90 = vld [vmem:[%s89] sm:$0x1]
    %91 = vrot.lane.b32.xlu0 %v90, 8
    %v92 = vpop.permute.xlu0 %91
    %vm93 = vcmask 130112
    %94 = vst.msk [vmem:[#allocation0] sm:$0x1] %vm93, %v92
    %s96 = ssub.s32 2, 1
    %v97 = vld [vmem:[#allocation0] sm:%s96]
    %s99 = ssub.s32 2, 1
    %100 = vst [vmem:[%s1] sm:%s99] %v97

// kernel: network_forward.1
$region0: #{network_forward.1}
  #allocation0 [shape = 'u32[]', space=smem, size = 0x4, offset = 0x4, fixed_abs, tag = 'smem constant byte address 0x4 - core index']
  #allocation1 [shape = 'u32[72,128]{1,0:T(1,128)}', space=vmem, size = 0x9000, scoped, tag = 'internal scratch']
  #allocation2 [shape = 'bf16[16,128]{1,0:T(8,128)(2,1)}', space=vmem, size = 0x1000, scoped, tag = 'scratch operand']
  %s0 = inlined_call_operand.vmem [shape: bf16[2,16,216], index: 0, kind: input, shape index: {}]
  %s1 = inlined_call_operand.vmem [shape: bf16[216,128], index: 1, kind: input, shape index: {}]
  %s2 = inlined_call_operand.vmem [shape: f32[1,128], index: 2, kind: input, shape index: {}]
  %s3 = inlined_call_operand.vmem [shape: bf16[2048,128], index: 3, kind: input, shape index: {}]
  %s4 = inlined_call_operand.vmem [shape: f32[1,128], index: 4, kind: input, shape index: {}]
  %s5 = inlined_call_operand.hbm [shape: f32[2,1,128], index: 5, kind: output, shape index: {}]
  %s6 = sld [smem:[#allocation0]]
  $region53: #{network_forward.1} parent=0
    _
  %s8 = ssub.s32 1, %s6
  %s9 = scalar_select 0, %s8, %s6
  $region1: #{network_forward.1} parent=0
    #allocation3 [shape = 'u8[1024]{0}', space=vmem, size = 0x400, scoped, tag = 'output window, operand 0']
    #allocation4 [shape = 's32[2]{0}', space=sflag, size = 0x8, scoped, tag = 'scoped memory for network_forward.1']
    %10 = vsyncpa [#allocation4], 0
    %s11 = scalar_lea.sflag [#allocation4], 1
    %12 = vsyncpa %s11, 0
    loop: start=0, step=1, limit=4
    $region2: #{network_forward.1} parent=1 // loop_pre_header
      _
    $region3: #{network_forward.1} parent=1 // loop_header
      %s14 = sphi 0, %s18
      %p15 = scmp.ge.s32.totalorder %s14, 4
      %s24 = sphi 0, %s26
      %s27 = sphi 0, %s24
      %s28 = sphi 0, %s27
      %s44 = sphi 0, %s28
      %s48 = sphi 0, %s48
      %s50 = sphi 0, %s48
      %s51 = sphi 0, %s50
      %s65 = sphi 0, %s51
      %s69 = sphi 0, %s69
      %s71 = sphi 0, %s69
      %s72 = sphi 0, %s71
      %s86 = sphi 0, %s72
      %s90 = sphi 0, %s90
      %s92 = sphi 0, %s90
      %s93 = sphi 0, %s92
      %s107 = sphi 0, %s93
      %s111 = sphi 0, %s111
      %s113 = sphi 0, %s111
      %s114 = sphi 0, %s113
      %s128 = sphi 0, %s114
      %s134 = sphi 0, %s136
      %s137 = sphi 0, %s134
      %s138 = sphi 0, %s137
      %s154 = sphi 0, %s138
    $region4: #{network_forward.1} parent=1 // loop_header_branch
      %17 = sbr.rel (%p15) target = $region8
    $region5: #{network_forward.1} parent=1 // loop_body
      %s19 = ssub.s32 %s14, 1
      %s20 = ssub.s32 %s14, 2
      %s21 = sadd.s32 %s14, 1
      %s22 = ssub.s32 %s14, %s21
      %p23 = scmp.eq.s32.totalorder %s22, 0
      %s25 = sadd.s32 %s24, 1
      %s26 = scalar_select %p23, %s24, %s25
      %p29 = pneg %p23
      %p30 = scmp.eq.s32.totalorder %s14, 1
      %p31 = por %p29, %p30
      %p32 = scmp.ne.s32.totalorder %s24, %s27
      %p33 = scmp.eq.s32.totalorder %s14, 0
      %p34 = por %p32, %p33
      %p35 = scmp.ne.s32.totalorder %s24, %s27
      %p36 = scmp.eq.s32.totalorder %s19, 1
      %p37 = por %p35, %p36
      %p38 = scmp.ne.s32.totalorder %s27, %s28
      %p39 = scmp.eq.s32.totalorder %s19, 0
      %p40 = por %p38, %p39
      %p41 = scmp.ne.s32.totalorder %s27, %s28
      %p42 = scmp.eq.s32.totalorder %s20, 1
      %p43 = por %p41, %p42
      %p45 = scmp.ne.s32.totalorder %s28, %s44
      %p46 = scmp.eq.s32.totalorder %s20, 0
      %p47 = por %p45, %p46
      %s49 = sadd.s32 %s48, 1
      %p52 = scmp.eq.s32.totalorder %s14, 1
      %p53 = scmp.ne.s32.totalorder %s48, %s50
      %p54 = scmp.eq.s32.totalorder %s14, 0
      %p55 = por %p53, %p54
      %p56 = scmp.ne.s32.totalorder %s48, %s50
      %p57 = scmp.eq.s32.totalorder %s19, 1
      %p58 = por %p56, %p57
      %p59 = scmp.ne.s32.totalorder %s50, %s51
      %p60 = scmp.eq.s32.totalorder %s19, 0
      %p61 = por %p59, %p60
      %p62 = scmp.ne.s32.totalorder %s50, %s51
      %p63 = scmp.eq.s32.totalorder %s20, 1
      %p64 = por %p62, %p63
      %p66 = scmp.ne.s32.totalorder %s51, %s65
      %p67 = scmp.eq.s32.totalorder %s20, 0
      %p68 = por %p66, %p67
      %s70 = sadd.s32 %s69, 1
      %p73 = scmp.eq.s32.totalorder %s14, 1
      %p74 = scmp.ne.s32.totalorder %s69, %s71
      %p75 = scmp.eq.s32.totalorder %s14, 0
      %p76 = por %p74, %p75
      %p77 = scmp.ne.s32.totalorder %s69, %s71
      %p78 = scmp.eq.s32.totalorder %s19, 1
      %p79 = por %p77, %p78
      %p80 = scmp.ne.s32.totalorder %s71, %s72
      %p81 = scmp.eq.s32.totalorder %s19, 0
      %p82 = por %p80, %p81
      %p83 = scmp.ne.s32.totalorder %s71, %s72
      %p84 = scmp.eq.s32.totalorder %s20, 1
      %p85 = por %p83, %p84
      %p87 = scmp.ne.s32.totalorder %s72, %s86
      %p88 = scmp.eq.s32.totalorder %s20, 0
      %p89 = por %p87, %p88
      %s91 = sadd.s32 %s90, 1
      %p94 = scmp.eq.s32.totalorder %s14, 1
      %p95 = scmp.ne.s32.totalorder %s90, %s92
      %p96 = scmp.eq.s32.totalorder %s14, 0
      %p97 = por %p95, %p96
      %p98 = scmp.ne.s32.totalorder %s90, %s92
      %p99 = scmp.eq.s32.totalorder %s19, 1
      %p100 = por %p98, %p99
      %p101 = scmp.ne.s32.totalorder %s92, %s93
      %p102 = scmp.eq.s32.totalorder %s19, 0
      %p103 = por %p101, %p102
      %p104 = scmp.ne.s32.totalorder %s92, %s93
      %p105 = scmp.eq.s32.totalorder %s20, 1
      %p106 = por %p104, %p105
      %p108 = scmp.ne.s32.totalorder %s93, %s107
      %p109 = scmp.eq.s32.totalorder %s20, 0
      %p110 = por %p108, %p109
      %s112 = sadd.s32 %s111, 1
      %p115 = scmp.eq.s32.totalorder %s14, 1
      %p116 = scmp.ne.s32.totalorder %s111, %s113
      %p117 = scmp.eq.s32.totalorder %s14, 0
      %p118 = por %p116, %p117
      %p119 = scmp.ne.s32.totalorder %s111, %s113
      %p120 = scmp.eq.s32.totalorder %s19, 1
      %p121 = por %p119, %p120
      %p122 = scmp.ne.s32.totalorder %s113, %s114
      %p123 = scmp.eq.s32.totalorder %s19, 0
      %p124 = por %p122, %p123
      %p125 = scmp.ne.s32.totalorder %s113, %s114
      %p126 = scmp.eq.s32.totalorder %s20, 1
      %p127 = por %p125, %p126
      %p129 = scmp.ne.s32.totalorder %s114, %s128
      %p130 = scmp.eq.s32.totalorder %s20, 0
      %p131 = por %p129, %p130
      %s132 = ssub.s32 %s14, %s21
      %p133 = scmp.eq.s32.totalorder %s132, 0
      %s135 = sadd.s32 %s134, 1
      %s136 = scalar_select %p133, %s134, %s135
      %p139 = pneg %p133
      %p140 = scmp.eq.s32.totalorder %s14, 1
      %p141 = por %p139, %p140
      %p142 = scmp.ne.s32.totalorder %s134, %s137
      %p143 = scmp.eq.s32.totalorder %s14, 0
      %p144 = por %p142, %p143
      %p145 = scmp.ne.s32.totalorder %s134, %s137
      %p146 = scmp.eq.s32.totalorder %s19, 1
      %p147 = por %p145, %p146
      %p148 = scmp.ne.s32.totalorder %s137, %s138
      %p149 = scmp.eq.s32.totalorder %s19, 0
      %p150 = por %p148, %p149
      %p151 = scmp.ne.s32.totalorder %s137, %s138
      %p152 = scmp.eq.s32.totalorder %s20, 1
      %p153 = por %p151, %p152
      %p155 = scmp.ne.s32.totalorder %s138, %s154
      %p156 = scmp.eq.s32.totalorder %s20, 0
      %p157 = por %p155, %p156
      %p158 = scmp.le.s32.totalorder 1, %s14
      %p159 = scmp.lt.s32.totalorder %s14, 3
      %p160 = pnand %p158, %p159
      %p161 = pneg %p160
      // Predicated region
      $region9: #{network_forward.1} parent=5 // pred_check
        _
      $region10: #{network_forward.1} parent=5 // pred_check_branch
        %163 = sbr.rel (%p160) target = $region12
      $region11: #{network_forward.1} parent=5 // pred_region
        %s164 = ssub.s32 %s14, 1
        // Predicated region
        $region13: #{network_forward.1} parent=11 // pred_check
          %p165 = pneg %p61
        $region14: #{network_forward.1} parent=11 // pred_check_branch
          %167 = sbr.rel (%p165) target = $region16
        $region15: #{network_forward.1} parent=11 // pred_region
          _
        $region16: #{network_forward.1} parent=11 // pred_fallthru
          _
        // Predicated region
        $region17: #{network_forward.1} parent=11 // pred_check
          %p168 = pneg %p82
        $region18: #{network_forward.1} parent=11 // pred_check_branch
          %170 = sbr.rel (%p168) target = $region20
        $region19: #{network_forward.1} parent=11 // pred_region
          _
        $region20: #{network_forward.1} parent=11 // pred_fallthru
          _
        // Predicated region
        $region21: #{network_forward.1} parent=11 // pred_check
          %p171 = pneg %p103
        $region22: #{network_forward.1} parent=11 // pred_check_branch
          %173 = sbr.rel (%p171) target = $region24
        $region23: #{network_forward.1} parent=11 // pred_region
          _
        $region24: #{network_forward.1} parent=11 // pred_fallthru
          _
        // Predicated region
        $region25: #{network_forward.1} parent=11 // pred_check
          %p174 = pneg %p124
        $region26: #{network_forward.1} parent=11 // pred_check_branch
          %176 = sbr.rel (%p174) target = $region28
        $region27: #{network_forward.1} parent=11 // pred_region
          _
        $region28: #{network_forward.1} parent=11 // pred_fallthru
          _
      $region12: #{network_forward.1} parent=5 // pred_fallthru
        _
      %p177 = scmp.lt.s32.totalorder %s14, 2
      // Predicated region
      $region29: #{network_forward.1} parent=5 // pred_check
        %p178 = pneg %p177
      $region30: #{network_forward.1} parent=5 // pred_check_branch
        %180 = sbr.rel (%p178) target = $region32
      $region31: #{network_forward.1} parent=5 // pred_region
        // Predicated region
        $region33: #{network_forward.1} parent=31 // pred_check
          %p181 = pneg %p34
        $region34: #{network_forward.1} parent=31 // pred_check_branch
          %183 = sbr.rel (%p181) target = $region36
        $region35: #{network_forward.1} parent=31 // pred_region
          %p184 = scmp.lt.s32.totalorder %s14, 1
          %s185 = scalar_select %p184, %s14, 1
          %s186 = smul.addr %s185, 4
          %s187 = smul.addr %s186, 4
          %s188 = scalar_lea.vmem %s0, %s187
        $region36: #{network_forward.1} parent=31 // pred_fallthru
          _
      $region32: #{network_forward.1} parent=5 // pred_fallthru
        _
      %p189 = scmp.le.s32.totalorder 1, %s14
      %p190 = scmp.lt.s32.totalorder %s14, 3
      %p191 = pnand %p189, %p190
      %p192 = pneg %p191
      // Predicated region
      $region37: #{network_forward.1} parent=5 // pred_check
        _
      $region38: #{network_forward.1} parent=5 // pred_check_branch
        %194 = sbr.rel (%p191) target = $region40
      $region39: #{network_forward.1} parent=5 // pred_region
        %s195 = ssub.s32 %s14, 1
        %p196 = scmp.lt.s32.totalorder %s19, 1
        %s197 = scalar_select %p196, %s19, 1
        %s198 = smul.addr %s197, 4
        %s199 = smul.addr %s198, 4
        %s200 = scalar_lea.vmem %s0, %s199
        %p201 = pneg %p40
        %p202 = pneg %p37
        %p203 = pneg %p61
        %p204 = pneg %p58
        %p205 = pneg %p82
        %p206 = pneg %p79
        %p207 = pneg %p103
        %p208 = pneg %p100
        %p209 = pneg %p124
        %p210 = pneg %p121
        %p211 = pneg %p150
        %p212 = pneg %p147
        %s213 = sand.u32 %s137, 1
        %s214 = scalar_lea.sflag [#allocation4], %s213
        %s215 = sand.u32 %s137, 1
        %s216 = scalar_lea.vmem [#allocation3], %s215
        %p217 = scmp.lt.s32.totalorder %s19, 1
        %s218 = scalar_select %p217, %s19, 1
        %s219 = smul.addr %s218, 4
        %s220 = smul.addr %s219, 4
        %s221 = scalar_lea.vmem %s0, %s220
        %v223 = vld [vmem:[%s221] sm:$0xff]
        %v224 = vld [vmem:[%s221 + $0x8] sm:$0xff]
        %v225 = vld [vmem:[%s1] sm:$0xf]
        %v226 = vld [vmem:[%s1 + $0x4] sm:$0xf]
        %v227 = vld [vmem:[%s1 + $0x8] sm:$0xf]
        %v228 = vld [vmem:[%s1 + $0xc] sm:$0xf]
        %v229 = vld [vmem:[%s1 + $0x10] sm:$0xf]
        %v230 = vld [vmem:[%s1 + $0x14] sm:$0xf]
        %v231 = vld [vmem:[%s1 + $0x18] sm:$0xf]
        %v232 = vld [vmem:[%s1 + $0x1c] sm:$0xf]
        %v233 = vld [vmem:[%s1 + $0x20] sm:$0xf]
        %v234 = vld [vmem:[%s1 + $0x24] sm:$0xf]
        %v235 = vld [vmem:[%s1 + $0x28] sm:$0xf]
        %v236 = vld [vmem:[%s1 + $0x2c] sm:$0xf]
        %v237 = vld [vmem:[%s1 + $0x30] sm:$0xf]
        %v238 = vld [vmem:[%s1 + $0x34] sm:$0xf]
        %v239 = vld [vmem:[%s1 + $0x38] sm:$0xf]
        %v240 = vld [vmem:[%s1 + $0x3c] sm:$0xf]
        %v241 = vld [vmem:[%s1 + $0x40] sm:$0xf]
        %v242 = vld [vmem:[%s1 + $0x44] sm:$0xf]
        %v243 = vld [vmem:[%s1 + $0x48] sm:$0xf]
        %v244 = vld [vmem:[%s1 + $0x4c] sm:$0xf]
        %v245 = vld [vmem:[%s1 + $0x50] sm:$0xf]
        %v246 = vld [vmem:[%s1 + $0x54] sm:$0xf]
        %v247 = vld [vmem:[%s1 + $0x58] sm:$0xf]
        %v248 = vld [vmem:[%s1 + $0x5c] sm:$0xf]
        %v249 = vld [vmem:[%s1 + $0x60] sm:$0xf]
        %v250 = vld [vmem:[%s1 + $0x64] sm:$0xf]
        %v251 = vld [vmem:[%s1 + $0x68] sm:$0xf]
        %v252 = vld [vmem:[%s2] sm:$0x1]
        %v254 = vperm.slane %v252, 0
        %v258 = vunpack.c.l.b16 %v223
        %v259 = vunpack.c.h.b16 %v223
        %v260 = vunpack.c.l.b16 %v224
        %v261 = vunpack.c.h.b16 %v224
        %v262 = vpack.c.b16 %v260, %v258
        %v263 = vpack.c.b16 %v261, %v259
        %v292 = vunpack.c.l.b16 %v225
        %v293 = vunpack.c.l.b16 %v226
        %v294 = vunpack.c.l.b16 %v227
        %v295 = vunpack.c.l.b16 %v228
        %v296 = vunpack.c.l.b16 %v229
        %v297 = vunpack.c.l.b16 %v230
        %v298 = vunpack.c.l.b16 %v231
        %v299 = vunpack.c.l.b16 %v232
        %v300 = vunpack.c.l.b16 %v233
        %v301 = vunpack.c.l.b16 %v234
        %v302 = vunpack.c.l.b16 %v235
        %v303 = vunpack.c.l.b16 %v236
        %v304 = vunpack.c.l.b16 %v237
        %v305 = vunpack.c.l.b16 %v238
        %v306 = vunpack.c.l.b16 %v239
        %v307 = vunpack.c.l.b16 %v240
        %v308 = vunpack.c.l.b16 %v241
        %v309 = vunpack.c.l.b16 %v242
        %v310 = vunpack.c.l.b16 %v243
        %v311 = vunpack.c.l.b16 %v244
        %v312 = vunpack.c.l.b16 %v245
        %v313 = vunpack.c.l.b16 %v246
        %v314 = vunpack.c.l.b16 %v247
        %v315 = vunpack.c.l.b16 %v248
        %v316 = vunpack.c.l.b16 %v249
        %v317 = vunpack.c.l.b16 %v250
        %v318 = vunpack.c.l.b16 %v251
        %v319 = vpack.c.b16 %v293, %v292
        %v320 = vpack.c.b16 %v295, %v294
        %v321 = vpack.c.b16 %v297, %v296
        %v322 = vpack.c.b16 %v299, %v298
        %v323 = vpack.c.b16 %v301, %v300
        %v324 = vpack.c.b16 %v303, %v302
        %v325 = vpack.c.b16 %v305, %v304
        %v326 = vpack.c.b16 %v307, %v306
        %v327 = vpack.c.b16 %v309, %v308
        %v328 = vpack.c.b16 %v311, %v310
        %v329 = vpack.c.b16 %v313, %v312
        %v330 = vpack.c.b16 %v315, %v314
        %v331 = vpack.c.b16 %v317, %v316
        %v332 = vpack.c.b16 %v318, %v318
        %vm346 = vcmask 719872
        %v348 = vsel %vm346, %v263, 0
        %vm350 = vcmask 1043456
        %v352 = vsel %vm350, %v332, 0
        %354 = vmatpush.bf16.msra.mxu0 %v326
        %355 = vmatpush.bf16.msra.mxu0 %v325
        %356 = vmatpush.bf16.msra.mxu0 %v324
        %357 = vmatpush.bf16.msra.mxu0 %v323
        %358 = vmatpush.bf16.msra.mxu0 %v322
        %359 = vmatpush.bf16.msra.mxu0 %v321
        %360 = vmatpush.bf16.msra.mxu0 %v320
        %361 = vmatpush.bf16.msra.mxu0 %v319
        %362 = vmatmul.bf16.gmra.mxu0 %v262
        %v363 = vpop.f32.mrf.mxu0
        %v364 = vadd.f32 %v254, %v363
        %v365 = vpop.f32.mrf.mxu0
        %v366 = vadd.f32 %v254, %v365
        %367 = vdwg.mxu0
        %368 = vmatpush.bf16.msra.mxu0 0
        %369 = vmatpush.bf16.msra.mxu0 0
        %370 = vmatpush.bf16.msra.mxu0 %v352
        %371 = vmatpush.bf16.msra.mxu0 %v331
        %372 = vmatpush.bf16.msra.mxu0 %v330
        %373 = vmatpush.bf16.msra.mxu0 %v329
        %374 = vmatpush.bf16.msra.mxu0 %v328
        %375 = vmatpush.bf16.msra.mxu0 %v327
        %376 = vmatmul.bf16.gmra.mxu0 %v348
        %v377 = vpop.f32.mrf.mxu0
        %v378 = vadd.f32 %v364, %v377
        %v379 = vpop.f32.mrf.mxu0
        %v380 = vadd.f32 %v366, %v379
        %381 = vdwg.mxu0
        %v382 = vmax.f32 %v378, 0.0
        %v383 = vmax.f32 %v380, 0.0
        %v384 = vpack.c.bf16 %v382, %v382
        %v385 = vpack.c.bf16 %v383, %v383
        %386 = vst [vmem:[#allocation2] sm:$0xf] %v384
        %387 = vst [vmem:[#allocation2 + $0x4] sm:$0xf] %v385
        %v388 = vld [vmem:[%s4] sm:$0x1]
        %v389 = vld [vmem:[#allocation2] sm:$0x1]
        %v390 = vld [vmem:[%s3] sm:$0xf]
        %v391 = vld [vmem:[%s3 + $0x4] sm:$0xf]
        %v392 = vld [vmem:[%s3 + $0x8] sm:$0xf]
        %v393 = vld [vmem:[%s3 + $0xc] sm:$0xf]
        %v394 = vld [vmem:[%s3 + $0x10] sm:$0xf]
        %v395 = vld [vmem:[%s3 + $0x14] sm:$0xf]
        %v396 = vld [vmem:[%s3 + $0x18] sm:$0xf]
        %v397 = vld [vmem:[%s3 + $0x1c] sm:$0xf]
        %v398 = vld [vmem:[%s3 + $0x20] sm:$0xf]
        %v399 = vld [vmem:[%s3 + $0x24] sm:$0xf]
        %v400 = vld [vmem:[%s3 + $0x28] sm:$0xf]
        %v401 = vld [vmem:[%s3 + $0x2c] sm:$0xf]
        %v402 = vld [vmem:[%s3 + $0x30] sm:$0xf]
        %v403 = vld [vmem:[%s3 + $0x34] sm:$0xf]
        %v404 = vld [vmem:[%s3 + $0x38] sm:$0xf]
        %v405 = vld [vmem:[%s3 + $0x3c] sm:$0xf]
        %v422 = vunpack.c.l.b16 %v390
        %v423 = vunpack.c.l.b16 %v391
        %v424 = vunpack.c.l.b16 %v392
        %v425 = vunpack.c.l.b16 %v393
        %v426 = vunpack.c.l.b16 %v394
        %v427 = vunpack.c.l.b16 %v395
        %v428 = vunpack.c.l.b16 %v396
        %v429 = vunpack.c.l.b16 %v397
        %v430 = vunpack.c.l.b16 %v398
        %v431 = vunpack.c.l.b16 %v399
        %v432 = vunpack.c.l.b16 %v400
        %v433 = vunpack.c.l.b16 %v401
        %v434 = vunpack.c.l.b16 %v402
        %v435 = vunpack.c.l.b16 %v403
        %v436 = vunpack.c.l.b16 %v404
        %v437 = vunpack.c.l.b16 %v405
        %v438 = vpack.c.b16 %v423, %v422
        %v439 = vpack.c.b16 %v425, %v424
        %v440 = vpack.c.b16 %v427, %v426
        %v441 = vpack.c.b16 %v429, %v428
        %v442 = vpack.c.b16 %v431, %v430
        %v443 = vpack.c.b16 %v433, %v432
        %v444 = vpack.c.b16 %v435, %v434
        %v445 = vpack.c.b16 %v437, %v436
        %454 = vmatpush.bf16.msra.mxu0 %v445
        %455 = vmatpush.bf16.msra.mxu0 %v444
        %456 = vmatpush.bf16.msra.mxu0 %v443
        %457 = vmatpush.bf16.msra.mxu0 %v442
        %458 = vmatpush.bf16.msra.mxu0 %v441
        %459 = vmatpush.bf16.msra.mxu0 %v440
        %460 = vmatpush.bf16.msra.mxu0 %v439
        %461 = vmatpush.bf16.msra.mxu0 %v438
        %462 = vmatmul.bf16.gmra.mxu0 %v389
        %v463 = vpop.f32.mrf.mxu0
        %v464 = vadd.f32 0.0, %v463
        %v465 = vpop.f32.mrf.mxu0
        %466 = vdwg.mxu0
        %v467 = vadd.f32 %v388, %v464
        %v468 = vld [vmem:[%s3 + $0x40] sm:$0xf]
        %v469 = vld [vmem:[%s3 + $0x44] sm:$0xf]
        %v470 = vld [vmem:[%s3 + $0x48] sm:$0xf]
        %v471 = vld [vmem:[%s3 + $0x4c] sm:$0xf]
        %v472 = vld [vmem:[%s3 + $0x50] sm:$0xf]
        %v473 = vld [vmem:[%s3 + $0x54] sm:$0xf]
        %v474 = vld [vmem:[%s3 + $0x58] sm:$0xf]
        %v475 = vld [vmem:[%s3 + $0x5c] sm:$0xf]
        %v476 = vld [vmem:[%s3 + $0x60] sm:$0xf]
        %v477 = vld [vmem:[%s3 + $0x64] sm:$0xf]
        %v478 = vld [vmem:[%s3 + $0x68] sm:$0xf]
        %v479 = vld [vmem:[%s3 + $0x6c] sm:$0xf]
        %v480 = vld [vmem:[%s3 + $0x70] sm:$0xf]
        %v481 = vld [vmem:[%s3 + $0x74] sm:$0xf]
        %v482 = vld [vmem:[%s3 + $0x78] sm:$0xf]
        %v483 = vld [vmem:[%s3 + $0x7c] sm:$0xf]
        %v485 = vunpack.c.l.b16 %v389
        %v486 = vpack.c.b16 %v485, %v485
        %v488 = vshrl.u32 %v486, 16
        %v507 = vunpack.c.l.b16 %v468
        %v508 = vunpack.c.l.b16 %v469
        %v509 = vunpack.c.l.b16 %v470
        %v510 = vunpack.c.l.b16 %v471
        %v511 = vunpack.c.l.b16 %v472
        %v512 = vunpack.c.l.b16 %v473
        %v513 = vunpack.c.l.b16 %v474
        %v514 = vunpack.c.l.b16 %v475
        %v515 = vunpack.c.l.b16 %v476
        %v516 = vunpack.c.l.b16 %v477
        %v517 = vunpack.c.l.b16 %v478
        %v518 = vunpack.c.l.b16 %v479
        %v519 = vunpack.c.l.b16 %v480
        %v520 = vunpack.c.l.b16 %v481
        %v521 = vunpack.c.l.b16 %v482
        %v522 = vunpack.c.l.b16 %v483
        %v523 = vpack.c.b16 %v508, %v507
        %v524 = vpack.c.b16 %v510, %v509
        %v525 = vpack.c.b16 %v512, %v511
        %v526 = vpack.c.b16 %v514, %v513
        %v527 = vpack.c.b16 %v516, %v515
        %v528 = vpack.c.b16 %v518, %v517
        %v529 = vpack.c.b16 %v520, %v519
        %v530 = vpack.c.b16 %v522, %v521
        %539 = vmatpush.bf16.msra.mxu0 %v530
        %540 = vmatpush.bf16.msra.mxu0 %v529
        %541 = vmatpush.bf16.msra.mxu0 %v528
        %542 = vmatpush.bf16.msra.mxu0 %v527
        %543 = vmatpush.bf16.msra.mxu0 %v526
        %544 = vmatpush.bf16.msra.mxu0 %v525
        %545 = vmatpush.bf16.msra.mxu0 %v524
        %546 = vmatpush.bf16.msra.mxu0 %v523
        %547 = vmatmul.bf16.gmra.mxu0 %v488
        %v548 = vpop.f32.mrf.mxu0
        %v549 = vadd.f32 0.0, %v548
        %v550 = vpop.f32.mrf.mxu0
        %551 = vdwg.mxu0
        %v552 = vadd.f32 %v467, %v549
        %v553 = vld [vmem:[#allocation2] sm:$0x2]
        %v554 = vld [vmem:[%s3 + $0x80] sm:$0xf]
        %v555 = vld [vmem:[%s3 + $0x84] sm:$0xf]
        %v556 = vld [vmem:[%s3 + $0x88] sm:$0xf]
        %v557 = vld [vmem:[%s3 + $0x8c] sm:$0xf]
        %v558 = vld [vmem:[%s3 + $0x90] sm:$0xf]
        %v559 = vld [vmem:[%s3 + $0x94] sm:$0xf]
        %v560 = vld [vmem:[%s3 + $0x98] sm:$0xf]
        %v561 = vld [vmem:[%s3 + $0x9c] sm:$0xf]
        %v562 = vld [vmem:[%s3 + $0xa0] sm:$0xf]
        %v563 = vld [vmem:[%s3 + $0xa4] sm:$0xf]
        %v564 = vld [vmem:[%s3 + $0xa8] sm:$0xf]
        %v565 = vld [vmem:[%s3 + $0xac] sm:$0xf]
        %v566 = vld [vmem:[%s3 + $0xb0] sm:$0xf]
        %v567 = vld [vmem:[%s3 + $0xb4] sm:$0xf]
        %v568 = vld [vmem:[%s3 + $0xb8] sm:$0xf]
        %v569 = vld [vmem:[%s3 + $0xbc] sm:$0xf]
        %v571 = vunpack.c.l.b16 %v553
        %v572 = vpack.c.b16 %v571, %v571
        %v573 = vrot.slane %v572, 1
        %v591 = vunpack.c.l.b16 %v554
        %v592 = vunpack.c.l.b16 %v555
        %v593 = vunpack.c.l.b16 %v556
        %v594 = vunpack.c.l.b16 %v557
        %v595 = vunpack.c.l.b16 %v558
        %v596 = vunpack.c.l.b16 %v559
        %v597 = vunpack.c.l.b16 %v560
        %v598 = vunpack.c.l.b16 %v561
        %v599 = vunpack.c.l.b16 %v562
        %v600 = vunpack.c.l.b16 %v563
        %v601 = vunpack.c.l.b16 %v564
        %v602 = vunpack.c.l.b16 %v565
        %v603 = vunpack.c.l.b16 %v566
        %v604 = vunpack.c.l.b16 %v567
        %v605 = vunpack.c.l.b16 %v568
        %v606 = vunpack.c.l.b16 %v569
        %v607 = vpack.c.b16 %v592, %v591
        %v608 = vpack.c.b16 %v594, %v593
        %v609 = vpack.c.b16 %v596, %v595
        %v610 = vpack.c.b16 %v598, %v597
        %v611 = vpack.c.b16 %v600, %v599
        %v612 = vpack.c.b16 %v602, %v601
        %v613 = vpack.c.b16 %v604, %v603
        %v614 = vpack.c.b16 %v606, %v605
        %623 = vmatpush.bf16.msra.mxu0 %v614
        %624 = vmatpush.bf16.msra.mxu0 %v613
        %625 = vmatpush.bf16.msra.mxu0 %v612
        %626 = vmatpush.bf16.msra.mxu0 %v611
        %627 = vmatpush.bf16.msra.mxu0 %v610
        %628 = vmatpush.bf16.msra.mxu0 %v609
        %629 = vmatpush.bf16.msra.mxu0 %v608
        %630 = vmatpush.bf16.msra.mxu0 %v607
        %631 = vmatmul.bf16.gmra.mxu0 %v573
        %v632 = vpop.f32.mrf.mxu0
        %v633 = vadd.f32 0.0, %v632
        %v634 = vpop.f32.mrf.mxu0
        %635 = vdwg.mxu0
        %v636 = vadd.f32 %v552, %v633
        %v637 = vld [vmem:[%s3 + $0xc0] sm:$0xf]
        %v638 = vld [vmem:[%s3 + $0xc4] sm:$0xf]
        %v639 = vld [vmem:[%s3 + $0xc8] sm:$0xf]
        %v640 = vld [vmem:[%s3 + $0xcc] sm:$0xf]
        %v641 = vld [vmem:[%s3 + $0xd0] sm:$0xf]
        %v642 = vld [vmem:[%s3 + $0xd4] sm:$0xf]
        %v643 = vld [vmem:[%s3 + $0xd8] sm:$0xf]
        %v644 = vld [vmem:[%s3 + $0xdc] sm:$0xf]
        %v645 = vld [vmem:[%s3 + $0xe0] sm:$0xf]
        %v646 = vld [vmem:[%s3 + $0xe4] sm:$0xf]
        %v647 = vld [vmem:[%s3 + $0xe8] sm:$0xf]
        %v648 = vld [vmem:[%s3 + $0xec] sm:$0xf]
        %v649 = vld [vmem:[%s3 + $0xf0] sm:$0xf]
        %v650 = vld [vmem:[%s3 + $0xf4] sm:$0xf]
        %v651 = vld [vmem:[%s3 + $0xf8] sm:$0xf]
        %v652 = vld [vmem:[%s3 + $0xfc] sm:$0xf]
        %v654 = vshrl.u32 %v572, 16
        %v656 = vrot.slane %v654, 1
        %v674 = vunpack.c.l.b16 %v637
        %v675 = vunpack.c.l.b16 %v638
        %v676 = vunpack.c.l.b16 %v639
        %v677 = vunpack.c.l.b16 %v640
        %v678 = vunpack.c.l.b16 %v641
        %v679 = vunpack.c.l.b16 %v642
        %v680 = vunpack.c.l.b16 %v643
        %v681 = vunpack.c.l.b16 %v644
        %v682 = vunpack.c.l.b16 %v645
        %v683 = vunpack.c.l.b16 %v646
        %v684 = vunpack.c.l.b16 %v647
        %v685 = vunpack.c.l.b16 %v648
        %v686 = vunpack.c.l.b16 %v649
        %v687 = vunpack.c.l.b16 %v650
        %v688 = vunpack.c.l.b16 %v651
        %v689 = vunpack.c.l.b16 %v652
        %v690 = vpack.c.b16 %v675, %v674
        %v691 = vpack.c.b16 %v677, %v676
        %v692 = vpack.c.b16 %v679, %v678
        %v693 = vpack.c.b16 %v681, %v680
        %v694 = vpack.c.b16 %v683, %v682
        %v695 = vpack.c.b16 %v685, %v684
        %v696 = vpack.c.b16 %v687, %v686
        %v697 = vpack.c.b16 %v689, %v688
        %706 = vmatpush.bf16.msra.mxu0 %v697
        %707 = vmatpush.bf16.msra.mxu0 %v696
        %708 = vmatpush.bf16.msra.mxu0 %v695
        %709 = vmatpush.bf16.msra.mxu0 %v694
        %710 = vmatpush.bf16.msra.mxu0 %v693
        %711 = vmatpush.bf16.msra.mxu0 %v692
        %712 = vmatpush.bf16.msra.mxu0 %v691
        %713 = vmatpush.bf16.msra.mxu0 %v690
        %714 = vmatmul.bf16.gmra.mxu0 %v656
        %v715 = vpop.f32.mrf.mxu0
        %v716 = vadd.f32 0.0, %v715
        %v717 = vpop.f32.mrf.mxu0
        %718 = vdwg.mxu0
        %v719 = vadd.f32 %v636, %v716
        %v720 = vld [vmem:[#allocation2] sm:$0x4]
        %v721 = vld [vmem:[%s3 + $0x100] sm:$0xf]
        %v722 = vld [vmem:[%s3 + $0x104] sm:$0xf]
        %v723 = vld [vmem:[%s3 + $0x108] sm:$0xf]
        %v724 = vld [vmem:[%s3 + $0x10c] sm:$0xf]
        %v725 = vld [vmem:[%s3 + $0x110] sm:$0xf]
        %v726 = vld [vmem:[%s3 + $0x114] sm:$0xf]
        %v727 = vld [vmem:[%s3 + $0x118] sm:$0xf]
        %v728 = vld [vmem:[%s3 + $0x11c] sm:$0xf]
        %v729 = vld [vmem:[%s3 + $0x120] sm:$0xf]
        %v730 = vld [vmem:[%s3 + $0x124] sm:$0xf]
        %v731 = vld [vmem:[%s3 + $0x128] sm:$0xf]
        %v732 = vld [vmem:[%s3 + $0x12c] sm:$0xf]
        %v733 = vld [vmem:[%s3 + $0x130] sm:$0xf]
        %v734 = vld [vmem:[%s3 + $0x134] sm:$0xf]
        %v735 = vld [vmem:[%s3 + $0x138] sm:$0xf]
        %v736 = vld [vmem:[%s3 + $0x13c] sm:$0xf]
        %v738 = vunpack.c.l.b16 %v720
        %v739 = vpack.c.b16 %v738, %v738
        %v740 = vrot.slane %v739, 2
        %v758 = vunpack.c.l.b16 %v721
        %v759 = vunpack.c.l.b16 %v722
        %v760 = vunpack.c.l.b16 %v723
        %v761 = vunpack.c.l.b16 %v724
        %v762 = vunpack.c.l.b16 %v725
        %v763 = vunpack.c.l.b16 %v726
        %v764 = vunpack.c.l.b16 %v727
        %v765 = vunpack.c.l.b16 %v728
        %v766 = vunpack.c.l.b16 %v729
        %v767 = vunpack.c.l.b16 %v730
        %v768 = vunpack.c.l.b16 %v731
        %v769 = vunpack.c.l.b16 %v732
        %v770 = vunpack.c.l.b16 %v733
        %v771 = vunpack.c.l.b16 %v734
        %v772 = vunpack.c.l.b16 %v735
        %v773 = vunpack.c.l.b16 %v736
        %v774 = vpack.c.b16 %v759, %v758
        %v775 = vpack.c.b16 %v761, %v760
        %v776 = vpack.c.b16 %v763, %v762
        %v777 = vpack.c.b16 %v765, %v764
        %v778 = vpack.c.b16 %v767, %v766
        %v779 = vpack.c.b16 %v769, %v768
        %v780 = vpack.c.b16 %v771, %v770
        %v781 = vpack.c.b16 %v773, %v772
        %790 = vmatpush.bf16.msra.mxu0 %v781
        %791 = vmatpush.bf16.msra.mxu0 %v780
        %792 = vmatpush.bf16.msra.mxu0 %v779
        %793 = vmatpush.bf16.msra.mxu0 %v778
        %794 = vmatpush.bf16.msra.mxu0 %v777
        %795 = vmatpush.bf16.msra.mxu0 %v776
        %796 = vmatpush.bf16.msra.mxu0 %v775
        %797 = vmatpush.bf16.msra.mxu0 %v774
        %798 = vmatmul.bf16.gmra.mxu0 %v740
        %v799 = vpop.f32.mrf.mxu0
        %v800 = vadd.f32 0.0, %v799
        %v801 = vpop.f32.mrf.mxu0
        %802 = vdwg.mxu0
        %v803 = vadd.f32 %v719, %v800
        %v804 = vld [vmem:[%s3 + $0x140] sm:$0xf]
        %v805 = vld [vmem:[%s3 + $0x144] sm:$0xf]
        %v806 = vld [vmem:[%s3 + $0x148] sm:$0xf]
        %v807 = vld [vmem:[%s3 + $0x14c] sm:$0xf]
        %v808 = vld [vmem:[%s3 + $0x150] sm:$0xf]
        %v809 = vld [vmem:[%s3 + $0x154] sm:$0xf]
        %v810 = vld [vmem:[%s3 + $0x158] sm:$0xf]
        %v811 = vld [vmem:[%s3 + $0x15c] sm:$0xf]
        %v812 = vld [vmem:[%s3 + $0x160] sm:$0xf]
        %v813 = vld [vmem:[%s3 + $0x164] sm:$0xf]
        %v814 = vld [vmem:[%s3 + $0x168] sm:$0xf]
        %v815 = vld [vmem:[%s3 + $0x16c] sm:$0xf]
        %v816 = vld [vmem:[%s3 + $0x170] sm:$0xf]
        %v817 = vld [vmem:[%s3 + $0x174] sm:$0xf]
        %v818 = vld [vmem:[%s3 + $0x178] sm:$0xf]
        %v819 = vld [vmem:[%s3 + $0x17c] sm:$0xf]
        %v821 = vshrl.u32 %v739, 16
        %v823 = vrot.slane %v821, 2
        %v841 = vunpack.c.l.b16 %v804
        %v842 = vunpack.c.l.b16 %v805
        %v843 = vunpack.c.l.b16 %v806
        %v844 = vunpack.c.l.b16 %v807
        %v845 = vunpack.c.l.b16 %v808
        %v846 = vunpack.c.l.b16 %v809
        %v847 = vunpack.c.l.b16 %v810
        %v848 = vunpack.c.l.b16 %v811
        %v849 = vunpack.c.l.b16 %v812
        %v850 = vunpack.c.l.b16 %v813
        %v851 = vunpack.c.l.b16 %v814
        %v852 = vunpack.c.l.b16 %v815
        %v853 = vunpack.c.l.b16 %v816
        %v854 = vunpack.c.l.b16 %v817
        %v855 = vunpack.c.l.b16 %v818
        %v856 = vunpack.c.l.b16 %v819
        %v857 = vpack.c.b16 %v842, %v841
        %v858 = vpack.c.b16 %v844, %v843
        %v859 = vpack.c.b16 %v846, %v845
        %v860 = vpack.c.b16 %v848, %v847
        %v861 = vpack.c.b16 %v850, %v849
        %v862 = vpack.c.b16 %v852, %v851
        %v863 = vpack.c.b16 %v854, %v853
        %v864 = vpack.c.b16 %v856, %v855
        %873 = vmatpush.bf16.msra.mxu0 %v864
        %874 = vmatpush.bf16.msra.mxu0 %v863
        %875 = vmatpush.bf16.msra.mxu0 %v862
        %876 = vmatpush.bf16.msra.mxu0 %v861
        %877 = vmatpush.bf16.msra.mxu0 %v860
        %878 = vmatpush.bf16.msra.mxu0 %v859
        %879 = vmatpush.bf16.msra.mxu0 %v858
        %880 = vmatpush.bf16.msra.mxu0 %v857
        %881 = vmatmul.bf16.gmra.mxu0 %v823
        %v882 = vpop.f32.mrf.mxu0
        %v883 = vadd.f32 0.0, %v882
        %v884 = vpop.f32.mrf.mxu0
        %885 = vdwg.mxu0
        %v886 = vadd.f32 %v803, %v883
        %v887 = vld [vmem:[#allocation2] sm:$0x8]
        %v888 = vld [vmem:[%s3 + $0x180] sm:$0xf]
        %v889 = vld [vmem:[%s3 + $0x184] sm:$0xf]
        %v890 = vld [vmem:[%s3 + $0x188] sm:$0xf]
        %v891 = vld [vmem:[%s3 + $0x18c] sm:$0xf]
        %v892 = vld [vmem:[%s3 + $0x190] sm:$0xf]
        %v893 = vld [vmem:[%s3 + $0x194] sm:$0xf]
        %v894 = vld [vmem:[%s3 + $0x198] sm:$0xf]
        %v895 = vld [vmem:[%s3 + $0x19c] sm:$0xf]
        %v896 = vld [vmem:[%s3 + $0x1a0] sm:$0xf]
        %v897 = vld [vmem:[%s3 + $0x1a4] sm:$0xf]
        %v898 = vld [vmem:[%s3 + $0x1a8] sm:$0xf]
        %v899 = vld [vmem:[%s3 + $0x1ac] sm:$0xf]
        %v900 = vld [vmem:[%s3 + $0x1b0] sm:$0xf]
        %v901 = vld [vmem:[%s3 + $0x1b4] sm:$0xf]
        %v902 = vld [vmem:[%s3 + $0x1b8] sm:$0xf]
        %v903 = vld [vmem:[%s3 + $0x1bc] sm:$0xf]
        %v905 = vunpack.c.l.b16 %v887
        %v906 = vpack.c.b16 %v905, %v905
        %v907 = vrot.slane %v906, 3
        %v925 = vunpack.c.l.b16 %v888
        %v926 = vunpack.c.l.b16 %v889
        %v927 = vunpack.c.l.b16 %v890
        %v928 = vunpack.c.l.b16 %v891
        %v929 = vunpack.c.l.b16 %v892
        %v930 = vunpack.c.l.b16 %v893
        %v931 = vunpack.c.l.b16 %v894
        %v932 = vunpack.c.l.b16 %v895
        %v933 = vunpack.c.l.b16 %v896
        %v934 = vunpack.c.l.b16 %v897
        %v935 = vunpack.c.l.b16 %v898
        %v936 = vunpack.c.l.b16 %v899
        %v937 = vunpack.c.l.b16 %v900
        %v938 = vunpack.c.l.b16 %v901
        %v939 = vunpack.c.l.b16 %v902
        %v940 = vunpack.c.l.b16 %v903
        %v941 = vpack.c.b16 %v926, %v925
        %v942 = vpack.c.b16 %v928, %v927
        %v943 = vpack.c.b16 %v930, %v929
        %v944 = vpack.c.b16 %v932, %v931
        %v945 = vpack.c.b16 %v934, %v933
        %v946 = vpack.c.b16 %v936, %v935
        %v947 = vpack.c.b16 %v938, %v937
        %v948 = vpack.c.b16 %v940, %v939
        %957 = vmatpush.bf16.msra.mxu0 %v948
        %958 = vmatpush.bf16.msra.mxu0 %v947
        %959 = vmatpush.bf16.msra.mxu0 %v946
        %960 = vmatpush.bf16.msra.mxu0 %v945
        %961 = vmatpush.bf16.msra.mxu0 %v944
        %962 = vmatpush.bf16.msra.mxu0 %v943
        %963 = vmatpush.bf16.msra.mxu0 %v942
        %964 = vmatpush.bf16.msra.mxu0 %v941
        %965 = vmatmul.bf16.gmra.mxu0 %v907
        %v966 = vpop.f32.mrf.mxu0
        %v967 = vadd.f32 0.0, %v966
        %v968 = vpop.f32.mrf.mxu0
        %969 = vdwg.mxu0
        %v970 = vadd.f32 %v886, %v967
        %v971 = vld [vmem:[%s3 + $0x1c0] sm:$0xf]
        %v972 = vld [vmem:[%s3 + $0x1c4] sm:$0xf]
        %v973 = vld [vmem:[%s3 + $0x1c8] sm:$0xf]
        %v974 = vld [vmem:[%s3 + $0x1cc] sm:$0xf]
        %v975 = vld [vmem:[%s3 + $0x1d0] sm:$0xf]
        %v976 = vld [vmem:[%s3 + $0x1d4] sm:$0xf]
        %v977 = vld [vmem:[%s3 + $0x1d8] sm:$0xf]
        %v978 = vld [vmem:[%s3 + $0x1dc] sm:$0xf]
        %v979 = vld [vmem:[%s3 + $0x1e0] sm:$0xf]
        %v980 = vld [vmem:[%s3 + $0x1e4] sm:$0xf]
        %v981 = vld [vmem:[%s3 + $0x1e8] sm:$0xf]
        %v982 = vld [vmem:[%s3 + $0x1ec] sm:$0xf]
        %v983 = vld [vmem:[%s3 + $0x1f0] sm:$0xf]
        %v984 = vld [vmem:[%s3 + $0x1f4] sm:$0xf]
        %v985 = vld [vmem:[%s3 + $0x1f8] sm:$0xf]
        %v986 = vld [vmem:[%s3 + $0x1fc] sm:$0xf]
        %v988 = vshrl.u32 %v906, 16
        %v990 = vrot.slane %v988, 3
        %v1008 = vunpack.c.l.b16 %v971
        %v1009 = vunpack.c.l.b16 %v972
        %v1010 = vunpack.c.l.b16 %v973
        %v1011 = vunpack.c.l.b16 %v974
        %v1012 = vunpack.c.l.b16 %v975
        %v1013 = vunpack.c.l.b16 %v976
        %v1014 = vunpack.c.l.b16 %v977
        %v1015 = vunpack.c.l.b16 %v978
        %v1016 = vunpack.c.l.b16 %v979
        %v1017 = vunpack.c.l.b16 %v980
        %v1018 = vunpack.c.l.b16 %v981
        %v1019 = vunpack.c.l.b16 %v982
        %v1020 = vunpack.c.l.b16 %v983
        %v1021 = vunpack.c.l.b16 %v984
        %v1022 = vunpack.c.l.b16 %v985
        %v1023 = vunpack.c.l.b16 %v986
        %v1024 = vpack.c.b16 %v1009, %v1008
        %v1025 = vpack.c.b16 %v1011, %v1010
        %v1026 = vpack.c.b16 %v1013, %v1012
        %v1027 = vpack.c.b16 %v1015, %v1014
        %v1028 = vpack.c.b16 %v1017, %v1016
        %v1029 = vpack.c.b16 %v1019, %v1018
        %v1030 = vpack.c.b16 %v1021, %v1020
        %v1031 = vpack.c.b16 %v1023, %v1022
        %1040 = vmatpush.bf16.msra.mxu0 %v1031
        %1041 = vmatpush.bf16.msra.mxu0 %v1030
        %1042 = vmatpush.bf16.msra.mxu0 %v1029
        %1043 = vmatpush.bf16.msra.mxu0 %v1028
        %1044 = vmatpush.bf16.msra.mxu0 %v1027
        %1045 = vmatpush.bf16.msra.mxu0 %v1026
        %1046 = vmatpush.bf16.msra.mxu0 %v1025
        %1047 = vmatpush.bf16.msra.mxu0 %v1024
        %1048 = vmatmul.bf16.gmra.mxu0 %v990
        %v1049 = vpop.f32.mrf.mxu0
        %v1050 = vadd.f32 0.0, %v1049
        %v1051 = vpop.f32.mrf.mxu0
        %1052 = vdwg.mxu0
        %v1053 = vadd.f32 %v970, %v1050
        %v1054 = vld [vmem:[#allocation2 + $0x4] sm:$0x1]
        %v1055 = vld [vmem:[%s3 + $0x200] sm:$0xf]
        %v1056 = vld [vmem:[%s3 + $0x204] sm:$0xf]
        %v1057 = vld [vmem:[%s3 + $0x208] sm:$0xf]
        %v1058 = vld [vmem:[%s3 + $0x20c] sm:$0xf]
        %v1059 = vld [vmem:[%s3 + $0x210] sm:$0xf]
        %v1060 = vld [vmem:[%s3 + $0x214] sm:$0xf]
        %v1061 = vld [vmem:[%s3 + $0x218] sm:$0xf]
        %v1062 = vld [vmem:[%s3 + $0x21c] sm:$0xf]
        %v1063 = vld [vmem:[%s3 + $0x220] sm:$0xf]
        %v1064 = vld [vmem:[%s3 + $0x224] sm:$0xf]
        %v1065 = vld [vmem:[%s3 + $0x228] sm:$0xf]
        %v1066 = vld [vmem:[%s3 + $0x22c] sm:$0xf]
        %v1067 = vld [vmem:[%s3 + $0x230] sm:$0xf]
        %v1068 = vld [vmem:[%s3 + $0x234] sm:$0xf]
        %v1069 = vld [vmem:[%s3 + $0x238] sm:$0xf]
        %v1070 = vld [vmem:[%s3 + $0x23c] sm:$0xf]
        %v1087 = vunpack.c.l.b16 %v1055
        %v1088 = vunpack.c.l.b16 %v1056
        %v1089 = vunpack.c.l.b16 %v1057
        %v1090 = vunpack.c.l.b16 %v1058
        %v1091 = vunpack.c.l.b16 %v1059
        %v1092 = vunpack.c.l.b16 %v1060
        %v1093 = vunpack.c.l.b16 %v1061
        %v1094 = vunpack.c.l.b16 %v1062
        %v1095 = vunpack.c.l.b16 %v1063
        %v1096 = vunpack.c.l.b16 %v1064
        %v1097 = vunpack.c.l.b16 %v1065
        %v1098 = vunpack.c.l.b16 %v1066
        %v1099 = vunpack.c.l.b16 %v1067
        %v1100 = vunpack.c.l.b16 %v1068
        %v1101 = vunpack.c.l.b16 %v1069
        %v1102 = vunpack.c.l.b16 %v1070
        %v1103 = vpack.c.b16 %v1088, %v1087
        %v1104 = vpack.c.b16 %v1090, %v1089
        %v1105 = vpack.c.b16 %v1092, %v1091
        %v1106 = vpack.c.b16 %v1094, %v1093
        %v1107 = vpack.c.b16 %v1096, %v1095
        %v1108 = vpack.c.b16 %v1098, %v1097
        %v1109 = vpack.c.b16 %v1100, %v1099
        %v1110 = vpack.c.b16 %v1102, %v1101
        %1119 = vmatpush.bf16.msra.mxu0 %v1110
        %1120 = vmatpush.bf16.msra.mxu0 %v1109
        %1121 = vmatpush.bf16.msra.mxu0 %v1108
        %1122 = vmatpush.bf16.msra.mxu0 %v1107
        %1123 = vmatpush.bf16.msra.mxu0 %v1106
        %1124 = vmatpush.bf16.msra.mxu0 %v1105
        %1125 = vmatpush.bf16.msra.mxu0 %v1104
        %1126 = vmatpush.bf16.msra.mxu0 %v1103
        %1127 = vmatmul.bf16.gmra.mxu0 %v1054
        %v1128 = vpop.f32.mrf.mxu0
        %v1129 = vadd.f32 0.0, %v1128
        %v1130 = vpop.f32.mrf.mxu0
        %1131 = vdwg.mxu0
        %v1132 = vadd.f32 %v1053, %v1129
        %v1133 = vld [vmem:[%s3 + $0x240] sm:$0xf]
        %v1134 = vld [vmem:[%s3 + $0x244] sm:$0xf]
        %v1135 = vld [vmem:[%s3 + $0x248] sm:$0xf]
        %v1136 = vld [vmem:[%s3 + $0x24c] sm:$0xf]
        %v1137 = vld [vmem:[%s3 + $0x250] sm:$0xf]
        %v1138 = vld [vmem:[%s3 + $0x254] sm:$0xf]
        %v1139 = vld [vmem:[%s3 + $0x258] sm:$0xf]
        %v1140 = vld [vmem:[%s3 + $0x25c] sm:$0xf]
        %v1141 = vld [vmem:[%s3 + $0x260] sm:$0xf]
        %v1142 = vld [vmem:[%s3 + $0x264] sm:$0xf]
        %v1143 = vld [vmem:[%s3 + $0x268] sm:$0xf]
        %v1144 = vld [vmem:[%s3 + $0x26c] sm:$0xf]
        %v1145 = vld [vmem:[%s3 + $0x270] sm:$0xf]
        %v1146 = vld [vmem:[%s3 + $0x274] sm:$0xf]
        %v1147 = vld [vmem:[%s3 + $0x278] sm:$0xf]
        %v1148 = vld [vmem:[%s3 + $0x27c] sm:$0xf]
        %v1150 = vunpack.c.l.b16 %v1054
        %v1151 = vpack.c.b16 %v1150, %v1150
        %v1153 = vshrl.u32 %v1151, 16
        %v1172 = vunpack.c.l.b16 %v1133
        %v1173 = vunpack.c.l.b16 %v1134
        %v1174 = vunpack.c.l.b16 %v1135
        %v1175 = vunpack.c.l.b16 %v1136
        %v1176 = vunpack.c.l.b16 %v1137
        %v1177 = vunpack.c.l.b16 %v1138
        %v1178 = vunpack.c.l.b16 %v1139
        %v1179 = vunpack.c.l.b16 %v1140
        %v1180 = vunpack.c.l.b16 %v1141
        %v1181 = vunpack.c.l.b16 %v1142
        %v1182 = vunpack.c.l.b16 %v1143
        %v1183 = vunpack.c.l.b16 %v1144
        %v1184 = vunpack.c.l.b16 %v1145
        %v1185 = vunpack.c.l.b16 %v1146
        %v1186 = vunpack.c.l.b16 %v1147
        %v1187 = vunpack.c.l.b16 %v1148
        %v1188 = vpack.c.b16 %v1173, %v1172
        %v1189 = vpack.c.b16 %v1175, %v1174
        %v1190 = vpack.c.b16 %v1177, %v1176
        %v1191 = vpack.c.b16 %v1179, %v1178
        %v1192 = vpack.c.b16 %v1181, %v1180
        %v1193 = vpack.c.b16 %v1183, %v1182
        %v1194 = vpack.c.b16 %v1185, %v1184
        %v1195 = vpack.c.b16 %v1187, %v1186
        %1204 = vmatpush.bf16.msra.mxu0 %v1195
        %1205 = vmatpush.bf16.msra.mxu0 %v1194
        %1206 = vmatpush.bf16.msra.mxu0 %v1193
        %1207 = vmatpush.bf16.msra.mxu0 %v1192
        %1208 = vmatpush.bf16.msra.mxu0 %v1191
        %1209 = vmatpush.bf16.msra.mxu0 %v1190
        %1210 = vmatpush.bf16.msra.mxu0 %v1189
        %1211 = vmatpush.bf16.msra.mxu0 %v1188
        %1212 = vmatmul.bf16.gmra.mxu0 %v1153
        %v1213 = vpop.f32.mrf.mxu0
        %v1214 = vadd.f32 0.0, %v1213
        %v1215 = vpop.f32.mrf.mxu0
        %1216 = vdwg.mxu0
        %v1217 = vadd.f32 %v1132, %v1214
        %v1218 = vld [vmem:[#allocation2 + $0x4] sm:$0x2]
        %v1219 = vld [vmem:[%s3 + $0x280] sm:$0xf]
        %v1220 = vld [vmem:[%s3 + $0x284] sm:$0xf]
        %v1221 = vld [vmem:[%s3 + $0x288] sm:$0xf]
        %v1222 = vld [vmem:[%s3 + $0x28c] sm:$0xf]
        %v1223 = vld [vmem:[%s3 + $0x290] sm:$0xf]
        %v1224 = vld [vmem:[%s3 + $0x294] sm:$0xf]
        %v1225 = vld [vmem:[%s3 + $0x298] sm:$0xf]
        %v1226 = vld [vmem:[%s3 + $0x29c] sm:$0xf]
        %v1227 = vld [vmem:[%s3 + $0x2a0] sm:$0xf]
        %v1228 = vld [vmem:[%s3 + $0x2a4] sm:$0xf]
        %v1229 = vld [vmem:[%s3 + $0x2a8] sm:$0xf]
        %v1230 = vld [vmem:[%s3 + $0x2ac] sm:$0xf]
        %v1231 = vld [vmem:[%s3 + $0x2b0] sm:$0xf]
        %v1232 = vld [vmem:[%s3 + $0x2b4] sm:$0xf]
        %v1233 = vld [vmem:[%s3 + $0x2b8] sm:$0xf]
        %v1234 = vld [vmem:[%s3 + $0x2bc] sm:$0xf]
        %v1236 = vunpack.c.l.b16 %v1218
        %v1237 = vpack.c.b16 %v1236, %v1236
        %v1238 = vrot.slane %v1237, 1
        %v1256 = vunpack.c.l.b16 %v1219
        %v1257 = vunpack.c.l.b16 %v1220
        %v1258 = vunpack.c.l.b16 %v1221
        %v1259 = vunpack.c.l.b16 %v1222
        %v1260 = vunpack.c.l.b16 %v1223
        %v1261 = vunpack.c.l.b16 %v1224
        %v1262 = vunpack.c.l.b16 %v1225
        %v1263 = vunpack.c.l.b16 %v1226
        %v1264 = vunpack.c.l.b16 %v1227
        %v1265 = vunpack.c.l.b16 %v1228
        %v1266 = vunpack.c.l.b16 %v1229
        %v1267 = vunpack.c.l.b16 %v1230
        %v1268 = vunpack.c.l.b16 %v1231
        %v1269 = vunpack.c.l.b16 %v1232
        %v1270 = vunpack.c.l.b16 %v1233
        %v1271 = vunpack.c.l.b16 %v1234
        %v1272 = vpack.c.b16 %v1257, %v1256
        %v1273 = vpack.c.b16 %v1259, %v1258
        %v1274 = vpack.c.b16 %v1261, %v1260
        %v1275 = vpack.c.b16 %v1263, %v1262
        %v1276 = vpack.c.b16 %v1265, %v1264
        %v1277 = vpack.c.b16 %v1267, %v1266
        %v1278 = vpack.c.b16 %v1269, %v1268
        %v1279 = vpack.c.b16 %v1271, %v1270
        %1288 = vmatpush.bf16.msra.mxu0 %v1279
        %1289 = vmatpush.bf16.msra.mxu0 %v1278
        %1290 = vmatpush.bf16.msra.mxu0 %v1277
        %1291 = vmatpush.bf16.msra.mxu0 %v1276
        %1292 = vmatpush.bf16.msra.mxu0 %v1275
        %1293 = vmatpush.bf16.msra.mxu0 %v1274
        %1294 = vmatpush.bf16.msra.mxu0 %v1273
        %1295 = vmatpush.bf16.msra.mxu0 %v1272
        %1296 = vmatmul.bf16.gmra.mxu0 %v1238
        %v1297 = vpop.f32.mrf.mxu0
        %v1298 = vadd.f32 0.0, %v1297
        %v1299 = vpop.f32.mrf.mxu0
        %1300 = vdwg.mxu0
        %v1301 = vadd.f32 %v1217, %v1298
        %v1302 = vld [vmem:[%s3 + $0x2c0] sm:$0xf]
        %v1303 = vld [vmem:[%s3 + $0x2c4] sm:$0xf]
        %v1304 = vld [vmem:[%s3 + $0x2c8] sm:$0xf]
        %v1305 = vld [vmem:[%s3 + $0x2cc] sm:$0xf]
        %v1306 = vld [vmem:[%s3 + $0x2d0] sm:$0xf]
        %v1307 = vld [vmem:[%s3 + $0x2d4] sm:$0xf]
        %v1308 = vld [vmem:[%s3 + $0x2d8] sm:$0xf]
        %v1309 = vld [vmem:[%s3 + $0x2dc] sm:$0xf]
        %v1310 = vld [vmem:[%s3 + $0x2e0] sm:$0xf]
        %v1311 = vld [vmem:[%s3 + $0x2e4] sm:$0xf]
        %v1312 = vld [vmem:[%s3 + $0x2e8] sm:$0xf]
        %v1313 = vld [vmem:[%s3 + $0x2ec] sm:$0xf]
        %v1314 = vld [vmem:[%s3 + $0x2f0] sm:$0xf]
        %v1315 = vld [vmem:[%s3 + $0x2f4] sm:$0xf]
        %v1316 = vld [vmem:[%s3 + $0x2f8] sm:$0xf]
        %v1317 = vld [vmem:[%s3 + $0x2fc] sm:$0xf]
        %v1319 = vshrl.u32 %v1237, 16
        %v1321 = vrot.slane %v1319, 1
        %v1339 = vunpack.c.l.b16 %v1302
        %v1340 = vunpack.c.l.b16 %v1303
        %v1341 = vunpack.c.l.b16 %v1304
        %v1342 = vunpack.c.l.b16 %v1305
        %v1343 = vunpack.c.l.b16 %v1306
        %v1344 = vunpack.c.l.b16 %v1307
        %v1345 = vunpack.c.l.b16 %v1308
        %v1346 = vunpack.c.l.b16 %v1309
        %v1347 = vunpack.c.l.b16 %v1310
        %v1348 = vunpack.c.l.b16 %v1311
        %v1349 = vunpack.c.l.b16 %v1312
        %v1350 = vunpack.c.l.b16 %v1313
        %v1351 = vunpack.c.l.b16 %v1314
        %v1352 = vunpack.c.l.b16 %v1315
        %v1353 = vunpack.c.l.b16 %v1316
        %v1354 = vunpack.c.l.b16 %v1317
        %v1355 = vpack.c.b16 %v1340, %v1339
        %v1356 = vpack.c.b16 %v1342, %v1341
        %v1357 = vpack.c.b16 %v1344, %v1343
        %v1358 = vpack.c.b16 %v1346, %v1345
        %v1359 = vpack.c.b16 %v1348, %v1347
        %v1360 = vpack.c.b16 %v1350, %v1349
        %v1361 = vpack.c.b16 %v1352, %v1351
        %v1362 = vpack.c.b16 %v1354, %v1353
        %1371 = vmatpush.bf16.msra.mxu0 %v1362
        %1372 = vmatpush.bf16.msra.mxu0 %v1361
        %1373 = vmatpush.bf16.msra.mxu0 %v1360
        %1374 = vmatpush.bf16.msra.mxu0 %v1359
        %1375 = vmatpush.bf16.msra.mxu0 %v1358
        %1376 = vmatpush.bf16.msra.mxu0 %v1357
        %1377 = vmatpush.bf16.msra.mxu0 %v1356
        %1378 = vmatpush.bf16.msra.mxu0 %v1355
        %1379 = vmatmul.bf16.gmra.mxu0 %v1321
        %v1380 = vpop.f32.mrf.mxu0
        %v1381 = vadd.f32 0.0, %v1380
        %v1382 = vpop.f32.mrf.mxu0
        %1383 = vdwg.mxu0
        %v1384 = vadd.f32 %v1301, %v1381
        %v1385 = vld [vmem:[#allocation2 + $0x4] sm:$0x4]
        %v1386 = vld [vmem:[%s3 + $0x300] sm:$0xf]
        %v1387 = vld [vmem:[%s3 + $0x304] sm:$0xf]
        %v1388 = vld [vmem:[%s3 + $0x308] sm:$0xf]
        %v1389 = vld [vmem:[%s3 + $0x30c] sm:$0xf]
        %v1390 = vld [vmem:[%s3 + $0x310] sm:$0xf]
        %v1391 = vld [vmem:[%s3 + $0x314] sm:$0xf]
        %v1392 = vld [vmem:[%s3 + $0x318] sm:$0xf]
        %v1393 = vld [vmem:[%s3 + $0x31c] sm:$0xf]
        %v1394 = vld [vmem:[%s3 + $0x320] sm:$0xf]
        %v1395 = vld [vmem:[%s3 + $0x324] sm:$0xf]
        %v1396 = vld [vmem:[%s3 + $0x328] sm:$0xf]
        %v1397 = vld [vmem:[%s3 + $0x32c] sm:$0xf]
        %v1398 = vld [vmem:[%s3 + $0x330] sm:$0xf]
        %v1399 = vld [vmem:[%s3 + $0x334] sm:$0xf]
        %v1400 = vld [vmem:[%s3 + $0x338] sm:$0xf]
        %v1401 = vld [vmem:[%s3 + $0x33c] sm:$0xf]
        %v1403 = vunpack.c.l.b16 %v1385
        %v1404 = vpack.c.b16 %v1403, %v1403
        %v1405 = vrot.slane %v1404, 2
        %v1423 = vunpack.c.l.b16 %v1386
        %v1424 = vunpack.c.l.b16 %v1387
        %v1425 = vunpack.c.l.b16 %v1388
        %v1426 = vunpack.c.l.b16 %v1389
        %v1427 = vunpack.c.l.b16 %v1390
        %v1428 = vunpack.c.l.b16 %v1391
        %v1429 = vunpack.c.l.b16 %v1392
        %v1430 = vunpack.c.l.b16 %v1393
        %v1431 = vunpack.c.l.b16 %v1394
        %v1432 = vunpack.c.l.b16 %v1395
        %v1433 = vunpack.c.l.b16 %v1396
        %v1434 = vunpack.c.l.b16 %v1397
        %v1435 = vunpack.c.l.b16 %v1398
        %v1436 = vunpack.c.l.b16 %v1399
        %v1437 = vunpack.c.l.b16 %v1400
        %v1438 = vunpack.c.l.b16 %v1401
        %v1439 = vpack.c.b16 %v1424, %v1423
        %v1440 = vpack.c.b16 %v1426, %v1425
        %v1441 = vpack.c.b16 %v1428, %v1427
        %v1442 = vpack.c.b16 %v1430, %v1429
        %v1443 = vpack.c.b16 %v1432, %v1431
        %v1444 = vpack.c.b16 %v1434, %v1433
        %v1445 = vpack.c.b16 %v1436, %v1435
        %v1446 = vpack.c.b16 %v1438, %v1437
        %1455 = vmatpush.bf16.msra.mxu0 %v1446
        %1456 = vmatpush.bf16.msra.mxu0 %v1445
        %1457 = vmatpush.bf16.msra.mxu0 %v1444
        %1458 = vmatpush.bf16.msra.mxu0 %v1443
        %1459 = vmatpush.bf16.msra.mxu0 %v1442
        %1460 = vmatpush.bf16.msra.mxu0 %v1441
        %1461 = vmatpush.bf16.msra.mxu0 %v1440
        %1462 = vmatpush.bf16.msra.mxu0 %v1439
        %1463 = vmatmul.bf16.gmra.mxu0 %v1405
        %v1464 = vpop.f32.mrf.mxu0
        %v1465 = vadd.f32 0.0, %v1464
        %v1466 = vpop.f32.mrf.mxu0
        %1467 = vdwg.mxu0
        %v1468 = vadd.f32 %v1384, %v1465
        %v1469 = vld [vmem:[%s3 + $0x340] sm:$0xf]
        %v1470 = vld [vmem:[%s3 + $0x344] sm:$0xf]
        %v1471 = vld [vmem:[%s3 + $0x348] sm:$0xf]
        %v1472 = vld [vmem:[%s3 + $0x34c] sm:$0xf]
        %v1473 = vld [vmem:[%s3 + $0x350] sm:$0xf]
        %v1474 = vld [vmem:[%s3 + $0x354] sm:$0xf]
        %v1475 = vld [vmem:[%s3 + $0x358] sm:$0xf]
        %v1476 = vld [vmem:[%s3 + $0x35c] sm:$0xf]
        %v1477 = vld [vmem:[%s3 + $0x360] sm:$0xf]
        %v1478 = vld [vmem:[%s3 + $0x364] sm:$0xf]
        %v1479 = vld [vmem:[%s3 + $0x368] sm:$0xf]
        %v1480 = vld [vmem:[%s3 + $0x36c] sm:$0xf]
        %v1481 = vld [vmem:[%s3 + $0x370] sm:$0xf]
        %v1482 = vld [vmem:[%s3 + $0x374] sm:$0xf]
        %v1483 = vld [vmem:[%s3 + $0x378] sm:$0xf]
        %v1484 = vld [vmem:[%s3 + $0x37c] sm:$0xf]
        %v1486 = vshrl.u32 %v1404, 16
        %v1488 = vrot.slane %v1486, 2
        %v1506 = vunpack.c.l.b16 %v1469
        %v1507 = vunpack.c.l.b16 %v1470
        %v1508 = vunpack.c.l.b16 %v1471
        %v1509 = vunpack.c.l.b16 %v1472
        %v1510 = vunpack.c.l.b16 %v1473
        %v1511 = vunpack.c.l.b16 %v1474
        %v1512 = vunpack.c.l.b16 %v1475
        %v1513 = vunpack.c.l.b16 %v1476
        %v1514 = vunpack.c.l.b16 %v1477
        %v1515 = vunpack.c.l.b16 %v1478
        %v1516 = vunpack.c.l.b16 %v1479
        %v1517 = vunpack.c.l.b16 %v1480
        %v1518 = vunpack.c.l.b16 %v1481
        %v1519 = vunpack.c.l.b16 %v1482
        %v1520 = vunpack.c.l.b16 %v1483
        %v1521 = vunpack.c.l.b16 %v1484
        %v1522 = vpack.c.b16 %v1507, %v1506
        %v1523 = vpack.c.b16 %v1509, %v1508
        %v1524 = vpack.c.b16 %v1511, %v1510
        %v1525 = vpack.c.b16 %v1513, %v1512
        %v1526 = vpack.c.b16 %v1515, %v1514
        %v1527 = vpack.c.b16 %v1517, %v1516
        %v1528 = vpack.c.b16 %v1519, %v1518
        %v1529 = vpack.c.b16 %v1521, %v1520
        %1538 = vmatpush.bf16.msra.mxu0 %v1529
        %1539 = vmatpush.bf16.msra.mxu0 %v1528
        %1540 = vmatpush.bf16.msra.mxu0 %v1527
        %1541 = vmatpush.bf16.msra.mxu0 %v1526
        %1542 = vmatpush.bf16.msra.mxu0 %v1525
        %1543 = vmatpush.bf16.msra.mxu0 %v1524
        %1544 = vmatpush.bf16.msra.mxu0 %v1523
        %1545 = vmatpush.bf16.msra.mxu0 %v1522
        %1546 = vmatmul.bf16.gmra.mxu0 %v1488
        %v1547 = vpop.f32.mrf.mxu0
        %v1548 = vadd.f32 0.0, %v1547
        %v1549 = vpop.f32.mrf.mxu0
        %1550 = vdwg.mxu0
        %v1551 = vadd.f32 %v1468, %v1548
        %v1552 = vld [vmem:[#allocation2 + $0x4] sm:$0x8]
        %v1553 = vld [vmem:[%s3 + $0x380] sm:$0xf]
        %v1554 = vld [vmem:[%s3 + $0x384] sm:$0xf]
        %v1555 = vld [vmem:[%s3 + $0x388] sm:$0xf]
        %v1556 = vld [vmem:[%s3 + $0x38c] sm:$0xf]
        %v1557 = vld [vmem:[%s3 + $0x390] sm:$0xf]
        %v1558 = vld [vmem:[%s3 + $0x394] sm:$0xf]
        %v1559 = vld [vmem:[%s3 + $0x398] sm:$0xf]
        %v1560 = vld [vmem:[%s3 + $0x39c] sm:$0xf]
        %v1561 = vld [vmem:[%s3 + $0x3a0] sm:$0xf]
        %v1562 = vld [vmem:[%s3 + $0x3a4] sm:$0xf]
        %v1563 = vld [vmem:[%s3 + $0x3a8] sm:$0xf]
        %v1564 = vld [vmem:[%s3 + $0x3ac] sm:$0xf]
        %v1565 = vld [vmem:[%s3 + $0x3b0] sm:$0xf]
        %v1566 = vld [vmem:[%s3 + $0x3b4] sm:$0xf]
        %v1567 = vld [vmem:[%s3 + $0x3b8] sm:$0xf]
        %v1568 = vld [vmem:[%s3 + $0x3bc] sm:$0xf]
        %v1570 = vunpack.c.l.b16 %v1552
        %v1571 = vpack.c.b16 %v1570, %v1570
        %v1572 = vrot.slane %v1571, 3
        %v1590 = vunpack.c.l.b16 %v1553
        %v1591 = vunpack.c.l.b16 %v1554
        %v1592 = vunpack.c.l.b16 %v1555
        %v1593 = vunpack.c.l.b16 %v1556
        %v1594 = vunpack.c.l.b16 %v1557
        %v1595 = vunpack.c.l.b16 %v1558
        %v1596 = vunpack.c.l.b16 %v1559
        %v1597 = vunpack.c.l.b16 %v1560
        %v1598 = vunpack.c.l.b16 %v1561
        %v1599 = vunpack.c.l.b16 %v1562
        %v1600 = vunpack.c.l.b16 %v1563
        %v1601 = vunpack.c.l.b16 %v1564
        %v1602 = vunpack.c.l.b16 %v1565
        %v1603 = vunpack.c.l.b16 %v1566
        %v1604 = vunpack.c.l.b16 %v1567
        %v1605 = vunpack.c.l.b16 %v1568
        %v1606 = vpack.c.b16 %v1591, %v1590
        %v1607 = vpack.c.b16 %v1593, %v1592
        %v1608 = vpack.c.b16 %v1595, %v1594
        %v1609 = vpack.c.b16 %v1597, %v1596
        %v1610 = vpack.c.b16 %v1599, %v1598
        %v1611 = vpack.c.b16 %v1601, %v1600
        %v1612 = vpack.c.b16 %v1603, %v1602
        %v1613 = vpack.c.b16 %v1605, %v1604
        %1622 = vmatpush.bf16.msra.mxu0 %v1613
        %1623 = vmatpush.bf16.msra.mxu0 %v1612
        %1624 = vmatpush.bf16.msra.mxu0 %v1611
        %1625 = vmatpush.bf16.msra.mxu0 %v1610
        %1626 = vmatpush.bf16.msra.mxu0 %v1609
        %1627 = vmatpush.bf16.msra.mxu0 %v1608
        %1628 = vmatpush.bf16.msra.mxu0 %v1607
        %1629 = vmatpush.bf16.msra.mxu0 %v1606
        %1630 = vmatmul.bf16.gmra.mxu0 %v1572
        %v1631 = vpop.f32.mrf.mxu0
        %v1632 = vadd.f32 0.0, %v1631
        %v1633 = vpop.f32.mrf.mxu0
        %1634 = vdwg.mxu0
        %v1635 = vadd.f32 %v1551, %v1632
        %v1636 = vld [vmem:[%s3 + $0x3c0] sm:$0xf]
        %v1637 = vld [vmem:[%s3 + $0x3c4] sm:$0xf]
        %v1638 = vld [vmem:[%s3 + $0x3c8] sm:$0xf]
        %v1639 = vld [vmem:[%s3 + $0x3cc] sm:$0xf]
        %v1640 = vld [vmem:[%s3 + $0x3d0] sm:$0xf]
        %v1641 = vld [vmem:[%s3 + $0x3d4] sm:$0xf]
        %v1642 = vld [vmem:[%s3 + $0x3d8] sm:$0xf]
        %v1643 = vld [vmem:[%s3 + $0x3dc] sm:$0xf]
        %v1644 = vld [vmem:[%s3 + $0x3e0] sm:$0xf]
        %v1645 = vld [vmem:[%s3 + $0x3e4] sm:$0xf]
        %v1646 = vld [vmem:[%s3 + $0x3e8] sm:$0xf]
        %v1647 = vld [vmem:[%s3 + $0x3ec] sm:$0xf]
        %v1648 = vld [vmem:[%s3 + $0x3f0] sm:$0xf]
        %v1649 = vld [vmem:[%s3 + $0x3f4] sm:$0xf]
        %v1650 = vld [vmem:[%s3 + $0x3f8] sm:$0xf]
        %v1651 = vld [vmem:[%s3 + $0x3fc] sm:$0xf]
        %v1653 = vshrl.u32 %v1571, 16
        %v1655 = vrot.slane %v1653, 3
        %v1673 = vunpack.c.l.b16 %v1636
        %v1674 = vunpack.c.l.b16 %v1637
        %v1675 = vunpack.c.l.b16 %v1638
        %v1676 = vunpack.c.l.b16 %v1639
        %v1677 = vunpack.c.l.b16 %v1640
        %v1678 = vunpack.c.l.b16 %v1641
        %v1679 = vunpack.c.l.b16 %v1642
        %v1680 = vunpack.c.l.b16 %v1643
        %v1681 = vunpack.c.l.b16 %v1644
        %v1682 = vunpack.c.l.b16 %v1645
        %v1683 = vunpack.c.l.b16 %v1646
        %v1684 = vunpack.c.l.b16 %v1647
        %v1685 = vunpack.c.l.b16 %v1648
        %v1686 = vunpack.c.l.b16 %v1649
        %v1687 = vunpack.c.l.b16 %v1650
        %v1688 = vunpack.c.l.b16 %v1651
        %v1689 = vpack.c.b16 %v1674, %v1673
        %v1690 = vpack.c.b16 %v1676, %v1675
        %v1691 = vpack.c.b16 %v1678, %v1677
        %v1692 = vpack.c.b16 %v1680, %v1679
        %v1693 = vpack.c.b16 %v1682, %v1681
        %v1694 = vpack.c.b16 %v1684, %v1683
        %v1695 = vpack.c.b16 %v1686, %v1685
        %v1696 = vpack.c.b16 %v1688, %v1687
        %1705 = vmatpush.bf16.msra.mxu0 %v1696
        %1706 = vmatpush.bf16.msra.mxu0 %v1695
        %1707 = vmatpush.bf16.msra.mxu0 %v1694
        %1708 = vmatpush.bf16.msra.mxu0 %v1693
        %1709 = vmatpush.bf16.msra.mxu0 %v1692
        %1710 = vmatpush.bf16.msra.mxu0 %v1691
        %1711 = vmatpush.bf16.msra.mxu0 %v1690
        %1712 = vmatpush.bf16.msra.mxu0 %v1689
        %1713 = vmatmul.bf16.gmra.mxu0 %v1655
        %v1714 = vpop.f32.mrf.mxu0
        %v1715 = vadd.f32 0.0, %v1714
        %v1716 = vpop.f32.mrf.mxu0
        %1717 = vdwg.mxu0
        %v1718 = vadd.f32 %v1635, %v1715
        %1719 = vst [vmem:[%s216] sm:$0x1] %v1718
        %s1720 = sand.u32 %s137, 1
        %s1721 = scalar_lea.sflag [#allocation4], %s1720
        %s1722 = sand.u32 %s137, 1
        %s1723 = scalar_lea.vmem [#allocation3], %s1722
        // Predicated region
        $region41: #{network_forward.1} parent=39 // pred_check
          %p1724 = pneg %p147
        $region42: #{network_forward.1} parent=39 // pred_check_branch
          %1726 = sbr.rel (%p1724) target = $region44
        $region43: #{network_forward.1} parent=39 // pred_region
          %1728 = vsyncadd %s1721, 0
          %s1729 = scalar_lea.hbm %s5, %s19
          %s1731 = sshll.u32 %s1723, 4
          %s1732 = int_to_ptr.vmem [resolvable:$true] %s1731
          %s1733 = sshll.u32 %s1729, 4
          %s1734 = int_to_ptr.hbm [resolvable:$true] %s1733
          %1736 = dma.vmem_to_hbm [thread:$0]  %s1732, 16, %s1734, %s1721
        $region44: #{network_forward.1} parent=39 // pred_fallthru
          _
      $region40: #{network_forward.1} parent=5 // pred_fallthru
        _
      %p1737 = scmp.le.s32.totalorder 2, %s14
      // Predicated region
      $region45: #{network_forward.1} parent=5 // pred_check
        %p1738 = pneg %p1737
      $region46: #{network_forward.1} parent=5 // pred_check_branch
        %1740 = sbr.rel (%p1738) target = $region48
      $region47: #{network_forward.1} parent=5 // pred_region
        %s1741 = ssub.s32 %s14, 2
        // Predicated region
        $region49: #{network_forward.1} parent=47 // pred_check
          %p1742 = pneg %p153
        $region50: #{network_forward.1} parent=47 // pred_check_branch
          %1744 = sbr.rel (%p1742) target = $region52
        $region51: #{network_forward.1} parent=47 // pred_region
          %s1745 = sand.u32 %s138, 1
          %s1746 = scalar_lea.sflag [#allocation4], %s1745
          %s1747 = sand.u32 %s138, 1
          %s1748 = scalar_lea.vmem [#allocation3], %s1747
          %1750 = dma.done %s1746, 16
        $region52: #{network_forward.1} parent=47 // pred_fallthru
          _
      $region48: #{network_forward.1} parent=5 // pred_fallthru
        _
    $region6: #{network_forward.1} parent=1 // loop_footer
      %s18 = sadd.s32 1, %s14
    $region7: #{network_forward.1} parent=1 // loop_footer_branch
      %13 = sbr.rel target = $region3
    $region8: #{network_forward.1} parent=1 // loop_exit
      _
    %1751 = vsyncpa [#allocation4], 1
    %s1752 = scalar_lea.sflag [#allocation4], 1
    %1753 = vsyncpa %s1752, 1

</llo_original>
